<compile_context>
chip_gen: v5e
topology: v5e:2x2
jax: 0.10.0
libtpu: 0.0.40
codegen_flags: <defaults>
</compile_context>

<pallas_src>
import numpy as np
import jax
import jax.numpy as jnp
from jax.experimental import pallas as pl
from jax.experimental.pallas import tpu as pltpu


# ----------------------------------------------------------------------------
# Fused Pallas kernel (one grid step = one batch element)
# ----------------------------------------------------------------------------
def _net1_fused_kernel(x_ref, t1_ref, b1_ref, t2_ref, b2_ref,
                       w1_ref, fb1_ref, w2_ref, fb2_ref, w3_ref, fb3_ref,
                       o_ref):
    f32 = jnp.float32
    bf16 = jnp.bfloat16

    x = x_ref[0].astype(bf16)                              # (32, 96): rows=h, lanes=w*3+cin

    # ---- conv1 (5x5, 3->6) as 5 banded matmuls; cols = parity*128 + pw*8 + cout ----
    y1 = jnp.zeros((28, 256), f32)
    for kh in range(5):
        y1 = y1 + jnp.dot(x[kh:kh + 28, :], t1_ref[kh],
                          preferred_element_type=f32)
    y1 = jnp.maximum(y1 + b1_ref[...], 0.0)                # bias + ReLU

    # ---- pool1 (2x2/2): lane direction = max of parity halves, row direction
    #      via 0/1 selection matmuls (pick even/odd rows) on the MXU. ----
    lane1 = jnp.maximum(y1[:, :128], y1[:, 128:])          # (28, 128)
    row1 = jax.lax.broadcasted_iota(jnp.int32, (14, 28), 0)
    col1 = jax.lax.broadcasted_iota(jnp.int32, (14, 28), 1)
    se1 = (col1 == 2 * row1).astype(f32)
    so1 = (col1 == 2 * row1 + 1).astype(f32)
    p1 = jnp.maximum(jnp.dot(se1, lane1, preferred_element_type=f32),
                     jnp.dot(so1, lane1, preferred_element_type=f32))   # (14, 128)

    # ---- conv2 (5x5, 6->16), same scheme; cols = parity*128 + pw2*16 + cout ----
    p1b = p1.astype(bf16)
    y2 = jnp.zeros((10, 256), f32)
    for kh in range(5):
        y2 = y2 + jnp.dot(p1b[kh:kh + 10, :], t2_ref[kh],
                          preferred_element_type=f32)
    y2 = jnp.maximum(y2 + b2_ref[...], 0.0)

    # ---- pool2 (2x2/2) ----
    lane2 = jnp.maximum(y2[:, :128], y2[:, 128:])          # (10, 128)
    row2 = jax.lax.broadcasted_iota(jnp.int32, (5, 10), 0)
    col2 = jax.lax.broadcasted_iota(jnp.int32, (5, 10), 1)
    se2 = (col2 == 2 * row2).astype(f32)
    so2 = (col2 == 2 * row2 + 1).astype(f32)
    p2 = jnp.maximum(jnp.dot(se2, lane2, preferred_element_type=f32),
                     jnp.dot(so2, lane2, preferred_element_type=f32))   # (5, 128)

    # ---- fc1 (400->120): NCHW flatten permutation baked into w1 (5, 128, 128) ----
    p2b = p2.astype(bf16)
    acc = jnp.zeros((1, 128), f32)
    for h in range(5):
        acc = acc + jnp.dot(p2b[h:h + 1, :], w1_ref[h],
                            preferred_element_type=f32)
    h1 = jnp.maximum(acc + fb1_ref[...], 0.0)              # (1, 128), first 120 valid

    # ---- fc2 (120->84) + ReLU, fc3 (84->10), all padded to 128 lanes ----
    h2 = jnp.maximum(jnp.dot(h1.astype(bf16), w2_ref[...],
                             preferred_element_type=f32) + fb2_ref[...], 0.0)
    h3 = jnp.dot(h2.astype(bf16), w3_ref[...],
                 preferred_element_type=f32) + fb3_ref[...]              # (1, 128)

    o_ref[0] = jnp.broadcast_to(h3, (8, 128)).astype(o_ref.dtype)


# ----------------------------------------------------------------------------
# Wrapper: one pallas_call for the whole forward pass
# ----------------------------------------------------------------------------
def net1_forward(x_nchw, kp):
    B = x_nchw.shape[0]
    # Layout plumbing only: NCHW -> NHWC -> (B, 32, 96) rows=h, lanes=w*3+cin.
    x_rows = jnp.transpose(x_nchw, (0, 2, 3, 1)).reshape(B, 32, 96)

    out = pl.pallas_call(
        _net1_fused_kernel,
        out_shape=jax.ShapeDtypeStruct((B, 8, 128), jnp.float32),
        grid=(B,),
        in_specs=[
            pl.BlockSpec((1, 32, 96), lambda b: (b, 0, 0)),    # image
            pl.BlockSpec((5, 96, 256), lambda b: (0, 0, 0)),   # conv1 band weights
            pl.BlockSpec((1, 256), lambda b: (0, 0)),          # conv1 bias
            pl.BlockSpec((5, 128, 256), lambda b: (0, 0, 0)),  # conv2 band weights
            pl.BlockSpec((1, 256), lambda b: (0, 0)),          # conv2 bias
            pl.BlockSpec((5, 128, 128), lambda b: (0, 0, 0)),  # fc1 weights (flatten baked in)
            pl.BlockSpec((1, 128), lambda b: (0, 0)),          # fc1 bias
            pl.BlockSpec((128, 128), lambda b: (0, 0)),        # fc2 weights
            pl.BlockSpec((1, 128), lambda b: (0, 0)),          # fc2 bias
            pl.BlockSpec((128, 128), lambda b: (0, 0)),        # fc3 weights
            pl.BlockSpec((1, 128), lambda b: (0, 0)),          # fc3 bias
        ],
        out_specs=pl.BlockSpec((1, 8, 128), lambda b: (b, 0, 0)),
        compiler_params=pltpu.CompilerParams(
            dimension_semantics=("parallel",)),                # megacore on v7x
    )(x_rows, kp["t1"], kp["b1"], kp["t2"], kp["b2"],
      kp["w1"], kp["c1"], kp["w2"], kp["c2"], kp["w3"], kp["c3"])

    return out[:, 0, :10]


# ----------------------------------------------------------------------------
# Host-side (one-time) weight preparation: banded conv weights, lane padding,
# flatten permutation baked into fc1, bf16 cast of matmul operands.
# ----------------------------------------------------------------------------
def prepare_kernel_params(params):
    w1 = np.asarray(params["conv1_w"], np.float32).reshape(5, 5, 3, 6)   # (kh,kw,cin,cout)
    b1 = np.asarray(params["conv1_b"], np.float32).reshape(-1)
    w2 = np.asarray(params["conv2_w"], np.float32).reshape(5, 5, 6, 16)
    b2 = np.asarray(params["conv2_b"], np.float32).reshape(-1)
    f1w = np.asarray(params["fc1_w"], np.float32)   # (400, 120)
    f1b = np.asarray(params["fc1_b"], np.float32).reshape(-1)
    f2w = np.asarray(params["fc2_w"], np.float32)   # (120, 84)
    f2b = np.asarray(params["fc2_b"], np.float32).reshape(-1)
    f3w = np.asarray(params["fc3_w"], np.float32)   # (84, 10)
    f3b = np.asarray(params["fc3_b"], np.float32).reshape(-1)

    # conv1 bands: t1[kh, w*3+ci, parity*128 + pw*8 + co] = w1[kh, w - (2*pw+parity), ci, co]
    t1 = np.zeros((5, 96, 256), np.float32)
    bb1 = np.zeros((1, 256), np.float32)
    for kh in range(5):
        for parity in range(2):
            for pw in range(14):
                ow = 2 * pw + parity
                col = parity * 128 + pw * 8
                for kw in range(5):
                    w_in = ow + kw
                    t1[kh, w_in * 3:w_in * 3 + 3, col:col + 6] = w1[kh, kw]
    for parity in range(2):
        for pw in range(14):
            bb1[0, parity * 128 + pw * 8: parity * 128 + pw * 8 + 6] = b1

    # conv2 bands: t2[kh, pw*8+ci, parity*128 + pw2*16 + co] = w2[kh, pw - (2*pw2+parity), ci, co]
    t2 = np.zeros((5, 128, 256), np.float32)
    bb2 = np.zeros((1, 256), np.float32)
    for kh in range(5):
        for parity in range(2):
            for pw2 in range(5):
                ow2 = 2 * pw2 + parity
                col = parity * 128 + pw2 * 16
                for kw in range(5):
                    p_in = ow2 + kw
                    t2[kh, p_in * 8:p_in * 8 + 6, col:col + 16] = w2[kh, kw]
    for parity in range(2):
        for pw2 in range(5):
            bb2[0, parity * 128 + pw2 * 16: parity * 128 + pw2 * 16 + 16] = b2

    # fc1 with torch.flatten (c, h, w) order baked in; pooled map arrives as
    # rows = h (5), lanes = w*16 + c.
    wf1 = np.zeros((5, 128, 128), np.float32)
    for h in range(5):
        for w in range(5):
            for c in range(16):
                wf1[h, w * 16 + c, :120] = f1w[c * 25 + h * 5 + w, :]
    cb1 = np.zeros((1, 128), np.float32); cb1[0, :120] = f1b

    wf2 = np.zeros((128, 128), np.float32); wf2[:120, :84] = f2w
    cb2 = np.zeros((1, 128), np.float32); cb2[0, :84] = f2b
    wf3 = np.zeros((128, 128), np.float32); wf3[:84, :10] = f3w
    cb3 = np.zeros((1, 128), np.float32); cb3[0, :10] = f3b

    return {
        "t1": jnp.asarray(t1, jnp.bfloat16), "b1": jnp.asarray(bb1),
        "t2": jnp.asarray(t2, jnp.bfloat16), "b2": jnp.asarray(bb2),
        "w1": jnp.asarray(wf1, jnp.bfloat16), "c1": jnp.asarray(cb1),
        "w2": jnp.asarray(wf2, jnp.bfloat16), "c2": jnp.asarray(cb2),
        "w3": jnp.asarray(wf3, jnp.bfloat16), "c3": jnp.asarray(cb3),
    }


# ----------------------------------------------------------------------------
# Pure-JAX f32 reference (correctness check only)
# ----------------------------------------------------------------------------
def _im2col(x_nhwc, k):
    B, H, W, C = x_nhwc.shape
    OH, OW = H - k + 1, W - k + 1
    cols = []
    for kh in range(k):
        for kw in range(k):
            cols.append(x_nhwc[:, kh:kh + OH, kw:kw + OW, :])
    patches = jnp.concatenate(cols, axis=-1)
    return patches.reshape(B * OH * OW, k * k * C), (B, OH, OW)


def net1_reference(x_nchw, params):
    B = x_nchw.shape[0]
    x = jnp.transpose(x_nchw, (0, 2, 3, 1))

    def conv(xh, w, b, k, cout):
        p, (Bb, OH, OW) = _im2col(xh, k)
        y = jnp.maximum(p @ w + b, 0.0)
        return y.reshape(Bb, OH, OW, cout)

    def pool(y):
        Bb, H, W, C = y.shape
        return y.reshape(Bb, H // 2, 2, W // 2, 2, C).max(axis=(2, 4))

    y = pool(conv(x, params["conv1_w"], params["conv1_b"], 5, 6))
    y = pool(conv(y, params["conv2_w"], params["conv2_b"], 5, 16))
    y = jnp.transpose(y, (0, 3, 1, 2)).reshape(B, 400)      # torch.flatten order (c,h,w)
    y = jnp.maximum(y @ params["fc1_w"] + params["fc1_b"], 0.0)
    y = jnp.maximum(y @ params["fc2_w"] + params["fc2_b"], 0.0)
    return y @ params["fc3_w"] + params["fc3_b"]


# ----------------------------------------------------------------------------
# Deterministic parameter initialization (shapes from Net1.__init__)
# ----------------------------------------------------------------------------
def init_params(key):
    def uniform(k, shape, fan_in):
        bound = 1.0 / jnp.sqrt(float(fan_in))
        return jax.random.uniform(k, shape, jnp.float32, -bound, bound)

    keys = jax.random.split(key, 10)
    return {
        # conv weights as (k*k*Cin, Cout), rows ordered (kh, kw, cin)
        "conv1_w": uniform(keys[0], (5 * 5 * 3, 6), 5 * 5 * 3),
        "conv1_b": uniform(keys[1], (1, 6), 5 * 5 * 3),
        "conv2_w": uniform(keys[2], (5 * 5 * 6, 16), 5 * 5 * 6),
        "conv2_b": uniform(keys[3], (1, 16), 5 * 5 * 6),
        # fc weights as (in, out)
        "fc1_w": uniform(keys[4], (400, 120), 400),
        "fc1_b": uniform(keys[5], (1, 120), 400),
        "fc2_w": uniform(keys[6], (120, 84), 120),
        "fc2_b": uniform(keys[7], (1, 84), 120),
        "fc3_w": uniform(keys[8], (84, 10), 84),
        "fc3_b": uniform(keys[9], (1, 10), 84),
    }


if __name__ == "__main__":
    key = jax.random.PRNGKey(0)
    k_x, k_p = jax.random.split(key)

    # Net1 requires 32x32 spatial input for the 16*5*5 flatten to hold.
    x = jax.random.normal(k_x, (2, 3, 32, 32), jnp.float32)   # NCHW like PyTorch
    params = init_params(k_p)
    kparams = prepare_kernel_params(params)

    out = jax.jit(net1_forward)(x, kparams)
    out = jax.block_until_ready(out)
    assert out.shape == (2, 10), out.shape

    ref = net1_reference(x, params)
    max_err = float(jnp.max(jnp.abs(out - ref)))
    assert jnp.allclose(out, ref, atol=2e-2, rtol=2e-2), max_err

    print("KERNEL_OK")
</pallas_src>

<mosaic_0001>
module attributes {stable_mosaic.version = 11 : i64} {
  func.func @_net1_fused_kernel(%arg0: i32, %arg1: memref<1x32x96xf32, #tpu.memory_space<vmem>>, %arg2: memref<5x96x256xbf16, #tpu.memory_space<vmem>>, %arg3: memref<1x256xf32, #tpu.memory_space<vmem>>, %arg4: memref<5x128x256xbf16, #tpu.memory_space<vmem>>, %arg5: memref<1x256xf32, #tpu.memory_space<vmem>>, %arg6: memref<5x128x128xbf16, #tpu.memory_space<vmem>>, %arg7: memref<1x128xf32, #tpu.memory_space<vmem>>, %arg8: memref<128x128xbf16, #tpu.memory_space<vmem>>, %arg9: memref<1x128xf32, #tpu.memory_space<vmem>>, %arg10: memref<128x128xbf16, #tpu.memory_space<vmem>>, %arg11: memref<1x128xf32, #tpu.memory_space<vmem>>, %arg12: memref<1x8x128xf32, #tpu.memory_space<vmem>>) attributes {dimension_semantics = [#tpu.dimension_semantics<parallel>], iteration_bounds = array<i64: 2>, scalar_prefetch = 0 : i64, scratch_operands = 0 : i64, tpu.core_type = #tpu.core_type<tc>, window_params = [{transform_indices = @transform_0, window_bounds = array<i64: 1, 32, 96>}, {pipeline_mode = #tpu.pipeline_mode<synchronous>, transform_indices = @transform_1, window_bounds = array<i64: 5, 96, 256>}, {pipeline_mode = #tpu.pipeline_mode<synchronous>, transform_indices = @transform_2, window_bounds = array<i64: 1, 256>}, {pipeline_mode = #tpu.pipeline_mode<synchronous>, transform_indices = @transform_3, window_bounds = array<i64: 5, 128, 256>}, {pipeline_mode = #tpu.pipeline_mode<synchronous>, transform_indices = @transform_4, window_bounds = array<i64: 1, 256>}, {pipeline_mode = #tpu.pipeline_mode<synchronous>, transform_indices = @transform_5, window_bounds = array<i64: 5, 128, 128>}, {pipeline_mode = #tpu.pipeline_mode<synchronous>, transform_indices = @transform_6, window_bounds = array<i64: 1, 128>}, {pipeline_mode = #tpu.pipeline_mode<synchronous>, transform_indices = @transform_7, window_bounds = array<i64: 128, 128>}, {pipeline_mode = #tpu.pipeline_mode<synchronous>, transform_indices = @transform_8, window_bounds = array<i64: 1, 128>}, {pipeline_mode = #tpu.pipeline_mode<synchronous>, transform_indices = @transform_9, window_bounds = array<i64: 128, 128>}, {pipeline_mode = #tpu.pipeline_mode<synchronous>, transform_indices = @transform_10, window_bounds = array<i64: 1, 128>}, {transform_indices = @transform_11, window_bounds = array<i64: 1, 8, 128>}]} {
    %c0 = arith.constant 0 : index
    %c0_0 = arith.constant 0 : index
    %c0_1 = arith.constant 0 : index
    %0 = vector.load %arg1[%c0, %c0_0, %c0_1] : memref<1x32x96xf32, #tpu.memory_space<vmem>>, vector<1x32x96xf32>
    %1 = vector.shape_cast %0 : vector<1x32x96xf32> to vector<32x96xf32>
    %2 = arith.truncf %1 : vector<32x96xf32> to vector<32x96xbf16>
    %cst = arith.constant 0.000000e+00 : f32
    %3 = vector.broadcast %cst : f32 to vector<28x256xf32>
    %4 = vector.extract_strided_slice %2 {offsets = [0, 0], sizes = [28, 96], strides = [1, 1]} : vector<32x96xbf16> to vector<28x96xbf16>
    %c0_2 = arith.constant 0 : index
    %c0_3 = arith.constant 0 : index
    %c0_4 = arith.constant 0 : index
    %5 = vector.load %arg2[%c0_2, %c0_3, %c0_4] : memref<5x96x256xbf16, #tpu.memory_space<vmem>>, vector<1x96x256xbf16>
    %6 = vector.shape_cast %5 : vector<1x96x256xbf16> to vector<96x256xbf16>
    %cst_5 = arith.constant dense<0.000000e+00> : vector<28x256xf32>
    %7 = tpu.matmul %4, %6, %cst_5 {dimension_numbers = #tpu.dot_dimension_numbers<[1], [0], [0], [1], [0, 0, 1, 1], [], []>} : vector<28x96xbf16>, vector<96x256xbf16>, vector<28x256xf32> -> vector<28x256xf32>
    %8 = arith.addf %3, %7 : vector<28x256xf32>
    %9 = vector.extract_strided_slice %2 {offsets = [1, 0], sizes = [28, 96], strides = [1, 1]} : vector<32x96xbf16> to vector<28x96xbf16>
    %c1 = arith.constant 1 : index
    %c0_6 = arith.constant 0 : index
    %c0_7 = arith.constant 0 : index
    %10 = vector.load %arg2[%c1, %c0_6, %c0_7] : memref<5x96x256xbf16, #tpu.memory_space<vmem>>, vector<1x96x256xbf16>
    %11 = vector.shape_cast %10 : vector<1x96x256xbf16> to vector<96x256xbf16>
    %cst_8 = arith.constant dense<0.000000e+00> : vector<28x256xf32>
    %12 = tpu.matmul %9, %11, %cst_8 {dimension_numbers = #tpu.dot_dimension_numbers<[1], [0], [0], [1], [0, 0, 1, 1], [], []>} : vector<28x96xbf16>, vector<96x256xbf16>, vector<28x256xf32> -> vector<28x256xf32>
    %13 = arith.addf %8, %12 : vector<28x256xf32>
    %14 = vector.extract_strided_slice %2 {offsets = [2, 0], sizes = [28, 96], strides = [1, 1]} : vector<32x96xbf16> to vector<28x96xbf16>
    %c2 = arith.constant 2 : index
    %c0_9 = arith.constant 0 : index
    %c0_10 = arith.constant 0 : index
    %15 = vector.load %arg2[%c2, %c0_9, %c0_10] : memref<5x96x256xbf16, #tpu.memory_space<vmem>>, vector<1x96x256xbf16>
    %16 = vector.shape_cast %15 : vector<1x96x256xbf16> to vector<96x256xbf16>
    %cst_11 = arith.constant dense<0.000000e+00> : vector<28x256xf32>
    %17 = tpu.matmul %14, %16, %cst_11 {dimension_numbers = #tpu.dot_dimension_numbers<[1], [0], [0], [1], [0, 0, 1, 1], [], []>} : vector<28x96xbf16>, vector<96x256xbf16>, vector<28x256xf32> -> vector<28x256xf32>
    %18 = arith.addf %13, %17 : vector<28x256xf32>
    %19 = vector.extract_strided_slice %2 {offsets = [3, 0], sizes = [28, 96], strides = [1, 1]} : vector<32x96xbf16> to vector<28x96xbf16>
    %c3 = arith.constant 3 : index
    %c0_12 = arith.constant 0 : index
    %c0_13 = arith.constant 0 : index
    %20 = vector.load %arg2[%c3, %c0_12, %c0_13] : memref<5x96x256xbf16, #tpu.memory_space<vmem>>, vector<1x96x256xbf16>
    %21 = vector.shape_cast %20 : vector<1x96x256xbf16> to vector<96x256xbf16>
    %cst_14 = arith.constant dense<0.000000e+00> : vector<28x256xf32>
    %22 = tpu.matmul %19, %21, %cst_14 {dimension_numbers = #tpu.dot_dimension_numbers<[1], [0], [0], [1], [0, 0, 1, 1], [], []>} : vector<28x96xbf16>, vector<96x256xbf16>, vector<28x256xf32> -> vector<28x256xf32>
    %23 = arith.addf %18, %22 : vector<28x256xf32>
    %24 = vector.extract_strided_slice %2 {offsets = [4, 0], sizes = [28, 96], strides = [1, 1]} : vector<32x96xbf16> to vector<28x96xbf16>
    %c4 = arith.constant 4 : index
    %c0_15 = arith.constant 0 : index
    %c0_16 = arith.constant 0 : index
    %25 = vector.load %arg2[%c4, %c0_15, %c0_16] : memref<5x96x256xbf16, #tpu.memory_space<vmem>>, vector<1x96x256xbf16>
    %26 = vector.shape_cast %25 : vector<1x96x256xbf16> to vector<96x256xbf16>
    %cst_17 = arith.constant dense<0.000000e+00> : vector<28x256xf32>
    %27 = tpu.matmul %24, %26, %cst_17 {dimension_numbers = #tpu.dot_dimension_numbers<[1], [0], [0], [1], [0, 0, 1, 1], [], []>} : vector<28x96xbf16>, vector<96x256xbf16>, vector<28x256xf32> -> vector<28x256xf32>
    %28 = arith.addf %23, %27 : vector<28x256xf32>
    %c0_18 = arith.constant 0 : index
    %c0_19 = arith.constant 0 : index
    %29 = vector.load %arg3[%c0_18, %c0_19] : memref<1x256xf32, #tpu.memory_space<vmem>>, vector<1x256xf32>
    %30 = vector.broadcast %29 : vector<1x256xf32> to vector<28x256xf32>
    %31 = arith.addf %28, %30 : vector<28x256xf32>
    %cst_20 = arith.constant 0.000000e+00 : f32
    %32 = vector.broadcast %cst_20 : f32 to vector<28x256xf32>
    %33 = arith.maximumf %31, %32 : vector<28x256xf32>
    %34 = vector.extract_strided_slice %33 {offsets = [0, 0], sizes = [28, 128], strides = [1, 1]} : vector<28x256xf32> to vector<28x128xf32>
    %35 = vector.extract_strided_slice %33 {offsets = [0, 128], sizes = [28, 128], strides = [1, 1]} : vector<28x256xf32> to vector<28x128xf32>
    %36 = arith.maximumf %34, %35 : vector<28x128xf32>
    %37 = tpu.iota {dimensions = array<i32: 0>} : vector<14x28xi32>
    %38 = tpu.iota {dimensions = array<i32: 1>} : vector<14x28xi32>
    %c2_i32 = arith.constant 2 : i32
    %39 = vector.broadcast %c2_i32 : i32 to vector<14x28xi32>
    %40 = arith.muli %39, %37 : vector<14x28xi32>
    %41 = arith.cmpi eq, %38, %40 : vector<14x28xi32>
    %42 = arith.extui %41 : vector<14x28xi1> to vector<14x28xi32>
    %43 = arith.sitofp %42 : vector<14x28xi32> to vector<14x28xf32>
    %c2_i32_21 = arith.constant 2 : i32
    %44 = vector.broadcast %c2_i32_21 : i32 to vector<14x28xi32>
    %45 = arith.muli %44, %37 : vector<14x28xi32>
    %c1_i32 = arith.constant 1 : i32
    %46 = vector.broadcast %c1_i32 : i32 to vector<14x28xi32>
    %47 = arith.addi %45, %46 : vector<14x28xi32>
    %48 = arith.cmpi eq, %38, %47 : vector<14x28xi32>
    %49 = arith.extui %48 : vector<14x28xi1> to vector<14x28xi32>
    %50 = arith.sitofp %49 : vector<14x28xi32> to vector<14x28xf32>
    %cst_22 = arith.constant dense<0.000000e+00> : vector<14x128xf32>
    %51 = tpu.matmul %43, %36, %cst_22 {dimension_numbers = #tpu.dot_dimension_numbers<[1], [0], [0], [1], [0, 0, 1, 1], [], []>} : vector<14x28xf32>, vector<28x128xf32>, vector<14x128xf32> -> vector<14x128xf32>
    %cst_23 = arith.constant dense<0.000000e+00> : vector<14x128xf32>
    %52 = tpu.matmul %50, %36, %cst_23 {dimension_numbers = #tpu.dot_dimension_numbers<[1], [0], [0], [1], [0, 0, 1, 1], [], []>} : vector<14x28xf32>, vector<28x128xf32>, vector<14x128xf32> -> vector<14x128xf32>
    %53 = arith.maximumf %51, %52 : vector<14x128xf32>
    %54 = arith.truncf %53 : vector<14x128xf32> to vector<14x128xbf16>
    %cst_24 = arith.constant 0.000000e+00 : f32
    %55 = vector.broadcast %cst_24 : f32 to vector<10x256xf32>
    %56 = vector.extract_strided_slice %54 {offsets = [0, 0], sizes = [10, 128], strides = [1, 1]} : vector<14x128xbf16> to vector<10x128xbf16>
    %c0_25 = arith.constant 0 : index
    %c0_26 = arith.constant 0 : index
    %c0_27 = arith.constant 0 : index
    %57 = vector.load %arg4[%c0_25, %c0_26, %c0_27] : memref<5x128x256xbf16, #tpu.memory_space<vmem>>, vector<1x128x256xbf16>
    %58 = vector.shape_cast %57 : vector<1x128x256xbf16> to vector<128x256xbf16>
    %cst_28 = arith.constant dense<0.000000e+00> : vector<10x256xf32>
    %59 = tpu.matmul %56, %58, %cst_28 {dimension_numbers = #tpu.dot_dimension_numbers<[1], [0], [0], [1], [0, 0, 1, 1], [], []>} : vector<10x128xbf16>, vector<128x256xbf16>, vector<10x256xf32> -> vector<10x256xf32>
    %60 = arith.addf %55, %59 : vector<10x256xf32>
    %61 = vector.extract_strided_slice %54 {offsets = [1, 0], sizes = [10, 128], strides = [1, 1]} : vector<14x128xbf16> to vector<10x128xbf16>
    %c1_29 = arith.constant 1 : index
    %c0_30 = arith.constant 0 : index
    %c0_31 = arith.constant 0 : index
    %62 = vector.load %arg4[%c1_29, %c0_30, %c0_31] : memref<5x128x256xbf16, #tpu.memory_space<vmem>>, vector<1x128x256xbf16>
    %63 = vector.shape_cast %62 : vector<1x128x256xbf16> to vector<128x256xbf16>
    %cst_32 = arith.constant dense<0.000000e+00> : vector<10x256xf32>
    %64 = tpu.matmul %61, %63, %cst_32 {dimension_numbers = #tpu.dot_dimension_numbers<[1], [0], [0], [1], [0, 0, 1, 1], [], []>} : vector<10x128xbf16>, vector<128x256xbf16>, vector<10x256xf32> -> vector<10x256xf32>
    %65 = arith.addf %60, %64 : vector<10x256xf32>
    %66 = vector.extract_strided_slice %54 {offsets = [2, 0], sizes = [10, 128], strides = [1, 1]} : vector<14x128xbf16> to vector<10x128xbf16>
    %c2_33 = arith.constant 2 : index
    %c0_34 = arith.constant 0 : index
    %c0_35 = arith.constant 0 : index
    %67 = vector.load %arg4[%c2_33, %c0_34, %c0_35] : memref<5x128x256xbf16, #tpu.memory_space<vmem>>, vector<1x128x256xbf16>
    %68 = vector.shape_cast %67 : vector<1x128x256xbf16> to vector<128x256xbf16>
    %cst_36 = arith.constant dense<0.000000e+00> : vector<10x256xf32>
    %69 = tpu.matmul %66, %68, %cst_36 {dimension_numbers = #tpu.dot_dimension_numbers<[1], [0], [0], [1], [0, 0, 1, 1], [], []>} : vector<10x128xbf16>, vector<128x256xbf16>, vector<10x256xf32> -> vector<10x256xf32>
    %70 = arith.addf %65, %69 : vector<10x256xf32>
    %71 = vector.extract_strided_slice %54 {offsets = [3, 0], sizes = [10, 128], strides = [1, 1]} : vector<14x128xbf16> to vector<10x128xbf16>
    %c3_37 = arith.constant 3 : index
    %c0_38 = arith.constant 0 : index
    %c0_39 = arith.constant 0 : index
    %72 = vector.load %arg4[%c3_37, %c0_38, %c0_39] : memref<5x128x256xbf16, #tpu.memory_space<vmem>>, vector<1x128x256xbf16>
    %73 = vector.shape_cast %72 : vector<1x128x256xbf16> to vector<128x256xbf16>
    %cst_40 = arith.constant dense<0.000000e+00> : vector<10x256xf32>
    %74 = tpu.matmul %71, %73, %cst_40 {dimension_numbers = #tpu.dot_dimension_numbers<[1], [0], [0], [1], [0, 0, 1, 1], [], []>} : vector<10x128xbf16>, vector<128x256xbf16>, vector<10x256xf32> -> vector<10x256xf32>
    %75 = arith.addf %70, %74 : vector<10x256xf32>
    %76 = vector.extract_strided_slice %54 {offsets = [4, 0], sizes = [10, 128], strides = [1, 1]} : vector<14x128xbf16> to vector<10x128xbf16>
    %c4_41 = arith.constant 4 : index
    %c0_42 = arith.constant 0 : index
    %c0_43 = arith.constant 0 : index
    %77 = vector.load %arg4[%c4_41, %c0_42, %c0_43] : memref<5x128x256xbf16, #tpu.memory_space<vmem>>, vector<1x128x256xbf16>
    %78 = vector.shape_cast %77 : vector<1x128x256xbf16> to vector<128x256xbf16>
    %cst_44 = arith.constant dense<0.000000e+00> : vector<10x256xf32>
    %79 = tpu.matmul %76, %78, %cst_44 {dimension_numbers = #tpu.dot_dimension_numbers<[1], [0], [0], [1], [0, 0, 1, 1], [], []>} : vector<10x128xbf16>, vector<128x256xbf16>, vector<10x256xf32> -> vector<10x256xf32>
    %80 = arith.addf %75, %79 : vector<10x256xf32>
    %c0_45 = arith.constant 0 : index
    %c0_46 = arith.constant 0 : index
    %81 = vector.load %arg5[%c0_45, %c0_46] : memref<1x256xf32, #tpu.memory_space<vmem>>, vector<1x256xf32>
    %82 = vector.broadcast %81 : vector<1x256xf32> to vector<10x256xf32>
    %83 = arith.addf %80, %82 : vector<10x256xf32>
    %cst_47 = arith.constant 0.000000e+00 : f32
    %84 = vector.broadcast %cst_47 : f32 to vector<10x256xf32>
    %85 = arith.maximumf %83, %84 : vector<10x256xf32>
    %86 = vector.extract_strided_slice %85 {offsets = [0, 0], sizes = [10, 128], strides = [1, 1]} : vector<10x256xf32> to vector<10x128xf32>
    %87 = vector.extract_strided_slice %85 {offsets = [0, 128], sizes = [10, 128], strides = [1, 1]} : vector<10x256xf32> to vector<10x128xf32>
    %88 = arith.maximumf %86, %87 : vector<10x128xf32>
    %89 = tpu.iota {dimensions = array<i32: 0>} : vector<5x10xi32>
    %90 = tpu.iota {dimensions = array<i32: 1>} : vector<5x10xi32>
    %c2_i32_48 = arith.constant 2 : i32
    %91 = vector.broadcast %c2_i32_48 : i32 to vector<5x10xi32>
    %92 = arith.muli %91, %89 : vector<5x10xi32>
    %93 = arith.cmpi eq, %90, %92 : vector<5x10xi32>
    %94 = arith.extui %93 : vector<5x10xi1> to vector<5x10xi32>
    %95 = arith.sitofp %94 : vector<5x10xi32> to vector<5x10xf32>
    %c2_i32_49 = arith.constant 2 : i32
    %96 = vector.broadcast %c2_i32_49 : i32 to vector<5x10xi32>
    %97 = arith.muli %96, %89 : vector<5x10xi32>
    %c1_i32_50 = arith.constant 1 : i32
    %98 = vector.broadcast %c1_i32_50 : i32 to vector<5x10xi32>
    %99 = arith.addi %97, %98 : vector<5x10xi32>
    %100 = arith.cmpi eq, %90, %99 : vector<5x10xi32>
    %101 = arith.extui %100 : vector<5x10xi1> to vector<5x10xi32>
    %102 = arith.sitofp %101 : vector<5x10xi32> to vector<5x10xf32>
    %cst_51 = arith.constant dense<0.000000e+00> : vector<5x128xf32>
    %103 = tpu.matmul %95, %88, %cst_51 {dimension_numbers = #tpu.dot_dimension_numbers<[1], [0], [0], [1], [0, 0, 1, 1], [], []>} : vector<5x10xf32>, vector<10x128xf32>, vector<5x128xf32> -> vector<5x128xf32>
    %cst_52 = arith.constant dense<0.000000e+00> : vector<5x128xf32>
    %104 = tpu.matmul %102, %88, %cst_52 {dimension_numbers = #tpu.dot_dimension_numbers<[1], [0], [0], [1], [0, 0, 1, 1], [], []>} : vector<5x10xf32>, vector<10x128xf32>, vector<5x128xf32> -> vector<5x128xf32>
    %105 = arith.maximumf %103, %104 : vector<5x128xf32>
    %106 = arith.truncf %105 : vector<5x128xf32> to vector<5x128xbf16>
    %cst_53 = arith.constant 0.000000e+00 : f32
    %107 = vector.broadcast %cst_53 : f32 to vector<1x128xf32>
    %108 = vector.extract_strided_slice %106 {offsets = [0, 0], sizes = [1, 128], strides = [1, 1]} : vector<5x128xbf16> to vector<1x128xbf16>
    %c0_54 = arith.constant 0 : index
    %c0_55 = arith.constant 0 : index
    %c0_56 = arith.constant 0 : index
    %109 = vector.load %arg6[%c0_54, %c0_55, %c0_56] : memref<5x128x128xbf16, #tpu.memory_space<vmem>>, vector<1x128x128xbf16>
    %110 = vector.shape_cast %109 : vector<1x128x128xbf16> to vector<128x128xbf16>
    %cst_57 = arith.constant dense<0.000000e+00> : vector<1x128xf32>
    %111 = tpu.matmul %108, %110, %cst_57 {dimension_numbers = #tpu.dot_dimension_numbers<[1], [0], [0], [1], [0, 0, 1, 1], [], []>} : vector<1x128xbf16>, vector<128x128xbf16>, vector<1x128xf32> -> vector<1x128xf32>
    %112 = arith.addf %107, %111 : vector<1x128xf32>
    %113 = vector.extract_strided_slice %106 {offsets = [1, 0], sizes = [1, 128], strides = [1, 1]} : vector<5x128xbf16> to vector<1x128xbf16>
    %c1_58 = arith.constant 1 : index
    %c0_59 = arith.constant 0 : index
    %c0_60 = arith.constant 0 : index
    %114 = vector.load %arg6[%c1_58, %c0_59, %c0_60] : memref<5x128x128xbf16, #tpu.memory_space<vmem>>, vector<1x128x128xbf16>
    %115 = vector.shape_cast %114 : vector<1x128x128xbf16> to vector<128x128xbf16>
    %cst_61 = arith.constant dense<0.000000e+00> : vector<1x128xf32>
    %116 = tpu.matmul %113, %115, %cst_61 {dimension_numbers = #tpu.dot_dimension_numbers<[1], [0], [0], [1], [0, 0, 1, 1], [], []>} : vector<1x128xbf16>, vector<128x128xbf16>, vector<1x128xf32> -> vector<1x128xf32>
    %117 = arith.addf %112, %116 : vector<1x128xf32>
    %118 = vector.extract_strided_slice %106 {offsets = [2, 0], sizes = [1, 128], strides = [1, 1]} : vector<5x128xbf16> to vector<1x128xbf16>
    %c2_62 = arith.constant 2 : index
    %c0_63 = arith.constant 0 : index
    %c0_64 = arith.constant 0 : index
    %119 = vector.load %arg6[%c2_62, %c0_63, %c0_64] : memref<5x128x128xbf16, #tpu.memory_space<vmem>>, vector<1x128x128xbf16>
    %120 = vector.shape_cast %119 : vector<1x128x128xbf16> to vector<128x128xbf16>
    %cst_65 = arith.constant dense<0.000000e+00> : vector<1x128xf32>
    %121 = tpu.matmul %118, %120, %cst_65 {dimension_numbers = #tpu.dot_dimension_numbers<[1], [0], [0], [1], [0, 0, 1, 1], [], []>} : vector<1x128xbf16>, vector<128x128xbf16>, vector<1x128xf32> -> vector<1x128xf32>
    %122 = arith.addf %117, %121 : vector<1x128xf32>
    %123 = vector.extract_strided_slice %106 {offsets = [3, 0], sizes = [1, 128], strides = [1, 1]} : vector<5x128xbf16> to vector<1x128xbf16>
    %c3_66 = arith.constant 3 : index
    %c0_67 = arith.constant 0 : index
    %c0_68 = arith.constant 0 : index
    %124 = vector.load %arg6[%c3_66, %c0_67, %c0_68] : memref<5x128x128xbf16, #tpu.memory_space<vmem>>, vector<1x128x128xbf16>
    %125 = vector.shape_cast %124 : vector<1x128x128xbf16> to vector<128x128xbf16>
    %cst_69 = arith.constant dense<0.000000e+00> : vector<1x128xf32>
    %126 = tpu.matmul %123, %125, %cst_69 {dimension_numbers = #tpu.dot_dimension_numbers<[1], [0], [0], [1], [0, 0, 1, 1], [], []>} : vector<1x128xbf16>, vector<128x128xbf16>, vector<1x128xf32> -> vector<1x128xf32>
    %127 = arith.addf %122, %126 : vector<1x128xf32>
    %128 = vector.extract_strided_slice %106 {offsets = [4, 0], sizes = [1, 128], strides = [1, 1]} : vector<5x128xbf16> to vector<1x128xbf16>
    %c4_70 = arith.constant 4 : index
    %c0_71 = arith.constant 0 : index
    %c0_72 = arith.constant 0 : index
    %129 = vector.load %arg6[%c4_70, %c0_71, %c0_72] : memref<5x128x128xbf16, #tpu.memory_space<vmem>>, vector<1x128x128xbf16>
    %130 = vector.shape_cast %129 : vector<1x128x128xbf16> to vector<128x128xbf16>
    %cst_73 = arith.constant dense<0.000000e+00> : vector<1x128xf32>
    %131 = tpu.matmul %128, %130, %cst_73 {dimension_numbers = #tpu.dot_dimension_numbers<[1], [0], [0], [1], [0, 0, 1, 1], [], []>} : vector<1x128xbf16>, vector<128x128xbf16>, vector<1x128xf32> -> vector<1x128xf32>
    %132 = arith.addf %127, %131 : vector<1x128xf32>
    %c0_74 = arith.constant 0 : index
    %c0_75 = arith.constant 0 : index
    %133 = vector.load %arg7[%c0_74, %c0_75] : memref<1x128xf32, #tpu.memory_space<vmem>>, vector<1x128xf32>
    %134 = arith.addf %132, %133 : vector<1x128xf32>
    %cst_76 = arith.constant 0.000000e+00 : f32
    %135 = vector.broadcast %cst_76 : f32 to vector<1x128xf32>
    %136 = arith.maximumf %134, %135 : vector<1x128xf32>
    %137 = arith.truncf %136 : vector<1x128xf32> to vector<1x128xbf16>
    %c0_77 = arith.constant 0 : index
    %c0_78 = arith.constant 0 : index
    %138 = vector.load %arg8[%c0_77, %c0_78] : memref<128x128xbf16, #tpu.memory_space<vmem>>, vector<128x128xbf16>
    %cst_79 = arith.constant dense<0.000000e+00> : vector<1x128xf32>
    %139 = tpu.matmul %137, %138, %cst_79 {dimension_numbers = #tpu.dot_dimension_numbers<[1], [0], [0], [1], [0, 0, 1, 1], [], []>} : vector<1x128xbf16>, vector<128x128xbf16>, vector<1x128xf32> -> vector<1x128xf32>
    %c0_80 = arith.constant 0 : index
    %c0_81 = arith.constant 0 : index
    %140 = vector.load %arg9[%c0_80, %c0_81] : memref<1x128xf32, #tpu.memory_space<vmem>>, vector<1x128xf32>
    %141 = arith.addf %139, %140 : vector<1x128xf32>
    %cst_82 = arith.constant 0.000000e+00 : f32
    %142 = vector.broadcast %cst_82 : f32 to vector<1x128xf32>
    %143 = arith.maximumf %141, %142 : vector<1x128xf32>
    %144 = arith.truncf %143 : vector<1x128xf32> to vector<1x128xbf16>
    %c0_83 = arith.constant 0 : index
    %c0_84 = arith.constant 0 : index
    %145 = vector.load %arg10[%c0_83, %c0_84] : memref<128x128xbf16, #tpu.memory_space<vmem>>, vector<128x128xbf16>
    %cst_85 = arith.constant dense<0.000000e+00> : vector<1x128xf32>
    %146 = tpu.matmul %144, %145, %cst_85 {dimension_numbers = #tpu.dot_dimension_numbers<[1], [0], [0], [1], [0, 0, 1, 1], [], []>} : vector<1x128xbf16>, vector<128x128xbf16>, vector<1x128xf32> -> vector<1x128xf32>
    %c0_86 = arith.constant 0 : index
    %c0_87 = arith.constant 0 : index
    %147 = vector.load %arg11[%c0_86, %c0_87] : memref<1x128xf32, #tpu.memory_space<vmem>>, vector<1x128xf32>
    %148 = arith.addf %146, %147 : vector<1x128xf32>
    %149 = vector.shape_cast %148 : vector<1x128xf32> to vector<1x128xf32>
    %150 = vector.broadcast %149 : vector<1x128xf32> to vector<8x128xf32>
    %c0_88 = arith.constant 0 : index
    %c0_89 = arith.constant 0 : index
    %c0_90 = arith.constant 0 : index
    %151 = vector.load %arg12[%c0_88, %c0_89, %c0_90] : memref<1x8x128xf32, #tpu.memory_space<vmem>>, vector<1x8x128xf32>
    %152 = vector.shape_cast %151 : vector<1x8x128xf32> to vector<8x128xf32>
    %153 = vector.shape_cast %150 : vector<8x128xf32> to vector<1x8x128xf32>
    tpu.vector_store %arg12[%c0_88, %c0_89, %c0_90], %153 {strides = array<i32>} : memref<1x8x128xf32, #tpu.memory_space<vmem>>, vector<1x8x128xf32>,
    return
  }
  func.func @transform_0(%arg0: i32) -> (i32, i32, i32) {
    %c0_i32 = arith.constant 0 : i32
    %c0_i32_0 = arith.constant 0 : i32
    %c0_i32_1 = arith.constant 0 : i32
    return %arg0, %c0_i32, %c0_i32_0 : i32, i32, i32
  }
  func.func @transform_1(%arg0: i32) -> (i32, i32, i32) {
    %c0_i32 = arith.constant 0 : i32
    %c0_i32_0 = arith.constant 0 : i32
    %c0_i32_1 = arith.constant 0 : i32
    %c0_i32_2 = arith.constant 0 : i32
    return %c0_i32, %c0_i32_0, %c0_i32_1 : i32, i32, i32
  }
  func.func @transform_2(%arg0: i32) -> (i32, i32) {
    %c0_i32 = arith.constant 0 : i32
    %c0_i32_0 = arith.constant 0 : i32
    %c0_i32_1 = arith.constant 0 : i32
    return %c0_i32, %c0_i32_0 : i32, i32
  }
  func.func @transform_3(%arg0: i32) -> (i32, i32, i32) {
    %c0_i32 = arith.constant 0 : i32
    %c0_i32_0 = arith.constant 0 : i32
    %c0_i32_1 = arith.constant 0 : i32
    %c0_i32_2 = arith.constant 0 : i32
    return %c0_i32, %c0_i32_0, %c0_i32_1 : i32, i32, i32
  }
  func.func @transform_4(%arg0: i32) -> (i32, i32) {
    %c0_i32 = arith.constant 0 : i32
    %c0_i32_0 = arith.constant 0 : i32
    %c0_i32_1 = arith.constant 0 : i32
    return %c0_i32, %c0_i32_0 : i32, i32
  }
  func.func @transform_5(%arg0: i32) -> (i32, i32, i32) {
    %c0_i32 = arith.constant 0 : i32
    %c0_i32_0 = arith.constant 0 : i32
    %c0_i32_1 = arith.constant 0 : i32
    %c0_i32_2 = arith.constant 0 : i32
    return %c0_i32, %c0_i32_0, %c0_i32_1 : i32, i32, i32
  }
  func.func @transform_6(%arg0: i32) -> (i32, i32) {
    %c0_i32 = arith.constant 0 : i32
    %c0_i32_0 = arith.constant 0 : i32
    %c0_i32_1 = arith.constant 0 : i32
    return %c0_i32, %c0_i32_0 : i32, i32
  }
  func.func @transform_7(%arg0: i32) -> (i32, i32) {
    %c0_i32 = arith.constant 0 : i32
    %c0_i32_0 = arith.constant 0 : i32
    %c0_i32_1 = arith.constant 0 : i32
    return %c0_i32, %c0_i32_0 : i32, i32
  }
  func.func @transform_8(%arg0: i32) -> (i32, i32) {
    %c0_i32 = arith.constant 0 : i32
    %c0_i32_0 = arith.constant 0 : i32
    %c0_i32_1 = arith.constant 0 : i32
    return %c0_i32, %c0_i32_0 : i32, i32
  }
  func.func @transform_9(%arg0: i32) -> (i32, i32) {
    %c0_i32 = arith.constant 0 : i32
    %c0_i32_0 = arith.constant 0 : i32
    %c0_i32_1 = arith.constant 0 : i32
    return %c0_i32, %c0_i32_0 : i32, i32
  }
  func.func @transform_10(%arg0: i32) -> (i32, i32) {
    %c0_i32 = arith.constant 0 : i32
    %c0_i32_0 = arith.constant 0 : i32
    %c0_i32_1 = arith.constant 0 : i32
    return %c0_i32, %c0_i32_0 : i32, i32
  }
  func.func @transform_11(%arg0: i32) -> (i32, i32, i32) {
    %c0_i32 = arith.constant 0 : i32
    %c0_i32_0 = arith.constant 0 : i32
    %c0_i32_1 = arith.constant 0 : i32
    return %arg0, %c0_i32, %c0_i32_0 : i32, i32, i32
  }
}

</mosaic_0001>

<llo_original>
// kernel: net1_forward.1
$region0: #{net1_forward.1}
  #allocation0 [shape = 'u32[]', space=smem, size = 0x4, offset = 0x4, fixed_abs, tag = 'smem constant byte address 0x4 - core index']
  #allocation1 [shape = 'u32[72,128]{1,0:T(1,128)}', space=vmem, size = 0x9000, scoped, tag = 'internal scratch']
  %s0 = inlined_call_operand.vmem [shape: f32[2,32,96], index: 0, kind: input, shape index: {}]
  %s1 = inlined_call_operand.hbm [shape: bf16[5,96,256], index: 1, kind: input, shape index: {}]
  %s2 = inlined_call_operand.vmem [shape: f32[1,256], index: 2, kind: input, shape index: {}]
  %s3 = inlined_call_operand.vmem [shape: bf16[5,128,256], index: 3, kind: input, shape index: {}]
  %s4 = inlined_call_operand.vmem [shape: f32[1,256], index: 4, kind: input, shape index: {}]
  %s5 = inlined_call_operand.hbm [shape: bf16[5,128,128], index: 5, kind: input, shape index: {}]
  %s6 = inlined_call_operand.vmem [shape: f32[1,128], index: 6, kind: input, shape index: {}]
  %s7 = inlined_call_operand.hbm [shape: bf16[128,128], index: 7, kind: input, shape index: {}]
  %s8 = inlined_call_operand.vmem [shape: f32[1,128], index: 8, kind: input, shape index: {}]
  %s9 = inlined_call_operand.hbm [shape: bf16[128,128], index: 9, kind: input, shape index: {}]
  %s10 = inlined_call_operand.vmem [shape: f32[1,128], index: 10, kind: input, shape index: {}]
  %s11 = inlined_call_operand.vmem [shape: f32[2,8,128], index: 11, kind: output, shape index: {}]
  %s12 = sld [smem:[#allocation0]]
  $region93: #{net1_forward.1} parent=0
    _
  %s14 = ssub.s32 1, %s12
  %s15 = scalar_select 0, %s14, %s12
  $region1: #{net1_forward.1} parent=0
    #allocation2 [shape = 'u8[245760]{0}', space=vmem, size = 0x3c000, scoped, tag = 'input window, operand 1, single buffered']
    #allocation3 [shape = 's32[2]{0}', space=sflag, size = 0x8, scoped, tag = 'scoped memory for net1_forward.1']
    #allocation4 [shape = 'u8[163840]{0}', space=vmem, size = 0x28000, scoped, tag = 'input window, operand 5, single buffered']
    #allocation5 [shape = 's32[1]{0}', space=sflag, size = 0x4, scoped, tag = 'scoped memory for net1_forward.1']
    #allocation6 [shape = 'u8[32768]{0}', space=vmem, size = 0x8000, scoped, tag = 'input window, operand 7, single buffered']
    #allocation7 [shape = 'u8[32768]{0}', space=vmem, size = 0x8000, scoped, tag = 'input window, operand 9, single buffered']
    #allocation8 [shape = 's32[1]{0}', space=sflag, size = 0x4, scoped, tag = 'scoped memory for net1_forward.1']
    %16 = vsyncpa [#allocation3], 0
    %17 = vsyncpa [#allocation5], 0
    %18 = vsyncpa [#allocation8], 0
    loop: start=0, step=1, limit=4
    $region2: #{net1_forward.1} parent=1 // loop_pre_header
      _
    $region3: #{net1_forward.1} parent=1 // loop_header
      %s20 = sphi 0, %s24
      %p21 = scmp.ge.s32.totalorder %s20, 4
      %s30 = sphi 0, %s32
      %s33 = sphi 0, %s30
      %s34 = sphi 0, %s33
      %s50 = sphi 0, %s34
      %s54 = sphi 0, %s54
      %s56 = sphi 0, %s54
      %s57 = sphi 0, %s56
      %s71 = sphi 0, %s57
      %s75 = sphi 0, %s75
      %s77 = sphi 0, %s75
      %s78 = sphi 0, %s77
      %s92 = sphi 0, %s78
      %s96 = sphi 0, %s96
      %s98 = sphi 0, %s96
      %s99 = sphi 0, %s98
      %s113 = sphi 0, %s99
      %s117 = sphi 0, %s117
      %s119 = sphi 0, %s117
      %s120 = sphi 0, %s119
      %s134 = sphi 0, %s120
      %s138 = sphi 0, %s138
      %s140 = sphi 0, %s138
      %s141 = sphi 0, %s140
      %s155 = sphi 0, %s141
      %s159 = sphi 0, %s159
      %s161 = sphi 0, %s159
      %s162 = sphi 0, %s161
      %s176 = sphi 0, %s162
      %s180 = sphi 0, %s180
      %s182 = sphi 0, %s180
      %s183 = sphi 0, %s182
      %s197 = sphi 0, %s183
      %s201 = sphi 0, %s201
      %s203 = sphi 0, %s201
      %s204 = sphi 0, %s203
      %s218 = sphi 0, %s204
      %s222 = sphi 0, %s222
      %s224 = sphi 0, %s222
      %s225 = sphi 0, %s224
      %s239 = sphi 0, %s225
      %s243 = sphi 0, %s243
      %s245 = sphi 0, %s243
      %s246 = sphi 0, %s245
      %s260 = sphi 0, %s246
      %s266 = sphi 0, %s268
      %s269 = sphi 0, %s266
      %s270 = sphi 0, %s269
      %s286 = sphi 0, %s270
    $region4: #{net1_forward.1} parent=1 // loop_header_branch
      %23 = sbr.rel (%p21) target = $region8
    $region5: #{net1_forward.1} parent=1 // loop_body
      %s25 = ssub.s32 %s20, 1
      %s26 = ssub.s32 %s20, 2
      %s27 = sadd.s32 %s20, 1
      %s28 = ssub.s32 %s20, %s27
      %p29 = scmp.eq.s32.totalorder %s28, 0
      %s31 = sadd.s32 %s30, 1
      %s32 = scalar_select %p29, %s30, %s31
      %p35 = pneg %p29
      %p36 = scmp.eq.s32.totalorder %s20, 1
      %p37 = por %p35, %p36
      %p38 = scmp.ne.s32.totalorder %s30, %s33
      %p39 = scmp.eq.s32.totalorder %s20, 0
      %p40 = por %p38, %p39
      %p41 = scmp.ne.s32.totalorder %s30, %s33
      %p42 = scmp.eq.s32.totalorder %s25, 1
      %p43 = por %p41, %p42
      %p44 = scmp.ne.s32.totalorder %s33, %s34
      %p45 = scmp.eq.s32.totalorder %s25, 0
      %p46 = por %p44, %p45
      %p47 = scmp.ne.s32.totalorder %s33, %s34
      %p48 = scmp.eq.s32.totalorder %s26, 1
      %p49 = por %p47, %p48
      %p51 = scmp.ne.s32.totalorder %s34, %s50
      %p52 = scmp.eq.s32.totalorder %s26, 0
      %p53 = por %p51, %p52
      %s55 = sadd.s32 %s54, 1
      %p58 = scmp.eq.s32.totalorder %s20, 1
      %p59 = scmp.ne.s32.totalorder %s54, %s56
      %p60 = scmp.eq.s32.totalorder %s20, 0
      %p61 = por %p59, %p60
      %p62 = scmp.ne.s32.totalorder %s54, %s56
      %p63 = scmp.eq.s32.totalorder %s25, 1
      %p64 = por %p62, %p63
      %p65 = scmp.ne.s32.totalorder %s56, %s57
      %p66 = scmp.eq.s32.totalorder %s25, 0
      %p67 = por %p65, %p66
      %p68 = scmp.ne.s32.totalorder %s56, %s57
      %p69 = scmp.eq.s32.totalorder %s26, 1
      %p70 = por %p68, %p69
      %p72 = scmp.ne.s32.totalorder %s57, %s71
      %p73 = scmp.eq.s32.totalorder %s26, 0
      %p74 = por %p72, %p73
      %s76 = sadd.s32 %s75, 1
      %p79 = scmp.eq.s32.totalorder %s20, 1
      %p80 = scmp.ne.s32.totalorder %s75, %s77
      %p81 = scmp.eq.s32.totalorder %s20, 0
      %p82 = por %p80, %p81
      %p83 = scmp.ne.s32.totalorder %s75, %s77
      %p84 = scmp.eq.s32.totalorder %s25, 1
      %p85 = por %p83, %p84
      %p86 = scmp.ne.s32.totalorder %s77, %s78
      %p87 = scmp.eq.s32.totalorder %s25, 0
      %p88 = por %p86, %p87
      %p89 = scmp.ne.s32.totalorder %s77, %s78
      %p90 = scmp.eq.s32.totalorder %s26, 1
      %p91 = por %p89, %p90
      %p93 = scmp.ne.s32.totalorder %s78, %s92
      %p94 = scmp.eq.s32.totalorder %s26, 0
      %p95 = por %p93, %p94
      %s97 = sadd.s32 %s96, 1
      %p100 = scmp.eq.s32.totalorder %s20, 1
      %p101 = scmp.ne.s32.totalorder %s96, %s98
      %p102 = scmp.eq.s32.totalorder %s20, 0
      %p103 = por %p101, %p102
      %p104 = scmp.ne.s32.totalorder %s96, %s98
      %p105 = scmp.eq.s32.totalorder %s25, 1
      %p106 = por %p104, %p105
      %p107 = scmp.ne.s32.totalorder %s98, %s99
      %p108 = scmp.eq.s32.totalorder %s25, 0
      %p109 = por %p107, %p108
      %p110 = scmp.ne.s32.totalorder %s98, %s99
      %p111 = scmp.eq.s32.totalorder %s26, 1
      %p112 = por %p110, %p111
      %p114 = scmp.ne.s32.totalorder %s99, %s113
      %p115 = scmp.eq.s32.totalorder %s26, 0
      %p116 = por %p114, %p115
      %s118 = sadd.s32 %s117, 1
      %p121 = scmp.eq.s32.totalorder %s20, 1
      %p122 = scmp.ne.s32.totalorder %s117, %s119
      %p123 = scmp.eq.s32.totalorder %s20, 0
      %p124 = por %p122, %p123
      %p125 = scmp.ne.s32.totalorder %s117, %s119
      %p126 = scmp.eq.s32.totalorder %s25, 1
      %p127 = por %p125, %p126
      %p128 = scmp.ne.s32.totalorder %s119, %s120
      %p129 = scmp.eq.s32.totalorder %s25, 0
      %p130 = por %p128, %p129
      %p131 = scmp.ne.s32.totalorder %s119, %s120
      %p132 = scmp.eq.s32.totalorder %s26, 1
      %p133 = por %p131, %p132
      %p135 = scmp.ne.s32.totalorder %s120, %s134
      %p136 = scmp.eq.s32.totalorder %s26, 0
      %p137 = por %p135, %p136
      %s139 = sadd.s32 %s138, 1
      %p142 = scmp.eq.s32.totalorder %s20, 1
      %p143 = scmp.ne.s32.totalorder %s138, %s140
      %p144 = scmp.eq.s32.totalorder %s20, 0
      %p145 = por %p143, %p144
      %p146 = scmp.ne.s32.totalorder %s138, %s140
      %p147 = scmp.eq.s32.totalorder %s25, 1
      %p148 = por %p146, %p147
      %p149 = scmp.ne.s32.totalorder %s140, %s141
      %p150 = scmp.eq.s32.totalorder %s25, 0
      %p151 = por %p149, %p150
      %p152 = scmp.ne.s32.totalorder %s140, %s141
      %p153 = scmp.eq.s32.totalorder %s26, 1
      %p154 = por %p152, %p153
      %p156 = scmp.ne.s32.totalorder %s141, %s155
      %p157 = scmp.eq.s32.totalorder %s26, 0
      %p158 = por %p156, %p157
      %s160 = sadd.s32 %s159, 1
      %p163 = scmp.eq.s32.totalorder %s20, 1
      %p164 = scmp.ne.s32.totalorder %s159, %s161
      %p165 = scmp.eq.s32.totalorder %s20, 0
      %p166 = por %p164, %p165
      %p167 = scmp.ne.s32.totalorder %s159, %s161
      %p168 = scmp.eq.s32.totalorder %s25, 1
      %p169 = por %p167, %p168
      %p170 = scmp.ne.s32.totalorder %s161, %s162
      %p171 = scmp.eq.s32.totalorder %s25, 0
      %p172 = por %p170, %p171
      %p173 = scmp.ne.s32.totalorder %s161, %s162
      %p174 = scmp.eq.s32.totalorder %s26, 1
      %p175 = por %p173, %p174
      %p177 = scmp.ne.s32.totalorder %s162, %s176
      %p178 = scmp.eq.s32.totalorder %s26, 0
      %p179 = por %p177, %p178
      %s181 = sadd.s32 %s180, 1
      %p184 = scmp.eq.s32.totalorder %s20, 1
      %p185 = scmp.ne.s32.totalorder %s180, %s182
      %p186 = scmp.eq.s32.totalorder %s20, 0
      %p187 = por %p185, %p186
      %p188 = scmp.ne.s32.totalorder %s180, %s182
      %p189 = scmp.eq.s32.totalorder %s25, 1
      %p190 = por %p188, %p189
      %p191 = scmp.ne.s32.totalorder %s182, %s183
      %p192 = scmp.eq.s32.totalorder %s25, 0
      %p193 = por %p191, %p192
      %p194 = scmp.ne.s32.totalorder %s182, %s183
      %p195 = scmp.eq.s32.totalorder %s26, 1
      %p196 = por %p194, %p195
      %p198 = scmp.ne.s32.totalorder %s183, %s197
      %p199 = scmp.eq.s32.totalorder %s26, 0
      %p200 = por %p198, %p199
      %s202 = sadd.s32 %s201, 1
      %p205 = scmp.eq.s32.totalorder %s20, 1
      %p206 = scmp.ne.s32.totalorder %s201, %s203
      %p207 = scmp.eq.s32.totalorder %s20, 0
      %p208 = por %p206, %p207
      %p209 = scmp.ne.s32.totalorder %s201, %s203
      %p210 = scmp.eq.s32.totalorder %s25, 1
      %p211 = por %p209, %p210
      %p212 = scmp.ne.s32.totalorder %s203, %s204
      %p213 = scmp.eq.s32.totalorder %s25, 0
      %p214 = por %p212, %p213
      %p215 = scmp.ne.s32.totalorder %s203, %s204
      %p216 = scmp.eq.s32.totalorder %s26, 1
      %p217 = por %p215, %p216
      %p219 = scmp.ne.s32.totalorder %s204, %s218
      %p220 = scmp.eq.s32.totalorder %s26, 0
      %p221 = por %p219, %p220
      %s223 = sadd.s32 %s222, 1
      %p226 = scmp.eq.s32.totalorder %s20, 1
      %p227 = scmp.ne.s32.totalorder %s222, %s224
      %p228 = scmp.eq.s32.totalorder %s20, 0
      %p229 = por %p227, %p228
      %p230 = scmp.ne.s32.totalorder %s222, %s224
      %p231 = scmp.eq.s32.totalorder %s25, 1
      %p232 = por %p230, %p231
      %p233 = scmp.ne.s32.totalorder %s224, %s225
      %p234 = scmp.eq.s32.totalorder %s25, 0
      %p235 = por %p233, %p234
      %p236 = scmp.ne.s32.totalorder %s224, %s225
      %p237 = scmp.eq.s32.totalorder %s26, 1
      %p238 = por %p236, %p237
      %p240 = scmp.ne.s32.totalorder %s225, %s239
      %p241 = scmp.eq.s32.totalorder %s26, 0
      %p242 = por %p240, %p241
      %s244 = sadd.s32 %s243, 1
      %p247 = scmp.eq.s32.totalorder %s20, 1
      %p248 = scmp.ne.s32.totalorder %s243, %s245
      %p249 = scmp.eq.s32.totalorder %s20, 0
      %p250 = por %p248, %p249
      %p251 = scmp.ne.s32.totalorder %s243, %s245
      %p252 = scmp.eq.s32.totalorder %s25, 1
      %p253 = por %p251, %p252
      %p254 = scmp.ne.s32.totalorder %s245, %s246
      %p255 = scmp.eq.s32.totalorder %s25, 0
      %p256 = por %p254, %p255
      %p257 = scmp.ne.s32.totalorder %s245, %s246
      %p258 = scmp.eq.s32.totalorder %s26, 1
      %p259 = por %p257, %p258
      %p261 = scmp.ne.s32.totalorder %s246, %s260
      %p262 = scmp.eq.s32.totalorder %s26, 0
      %p263 = por %p261, %p262
      %s264 = ssub.s32 %s20, %s27
      %p265 = scmp.eq.s32.totalorder %s264, 0
      %s267 = sadd.s32 %s266, 1
      %s268 = scalar_select %p265, %s266, %s267
      %p271 = pneg %p265
      %p272 = scmp.eq.s32.totalorder %s20, 1
      %p273 = por %p271, %p272
      %p274 = scmp.ne.s32.totalorder %s266, %s269
      %p275 = scmp.eq.s32.totalorder %s20, 0
      %p276 = por %p274, %p275
      %p277 = scmp.ne.s32.totalorder %s266, %s269
      %p278 = scmp.eq.s32.totalorder %s25, 1
      %p279 = por %p277, %p278
      %p280 = scmp.ne.s32.totalorder %s269, %s270
      %p281 = scmp.eq.s32.totalorder %s25, 0
      %p282 = por %p280, %p281
      %p283 = scmp.ne.s32.totalorder %s269, %s270
      %p284 = scmp.eq.s32.totalorder %s26, 1
      %p285 = por %p283, %p284
      %p287 = scmp.ne.s32.totalorder %s270, %s286
      %p288 = scmp.eq.s32.totalorder %s26, 0
      %p289 = por %p287, %p288
      %p290 = scmp.le.s32.totalorder 1, %s20
      %p291 = scmp.lt.s32.totalorder %s20, 3
      %p292 = pnand %p290, %p291
      %p293 = pneg %p292
      // Predicated region
      $region9: #{net1_forward.1} parent=5 // pred_check
        _
      $region10: #{net1_forward.1} parent=5 // pred_check_branch
        %295 = sbr.rel (%p292) target = $region12
      $region11: #{net1_forward.1} parent=5 // pred_region
        %s296 = ssub.s32 %s20, 1
        // Predicated region
        $region13: #{net1_forward.1} parent=11 // pred_check
          %p297 = pneg %p67
        $region14: #{net1_forward.1} parent=11 // pred_check_branch
          %299 = sbr.rel (%p297) target = $region16
        $region15: #{net1_forward.1} parent=11 // pred_region
          %301 = vsyncadd [#allocation3], 0
          %s302 = sshll.u32 %s1, 4
          %s303 = int_to_ptr.hbm [resolvable:$true] %s302
          %s304 = sshll.u32 [#allocation2], 4
          %s305 = int_to_ptr.vmem [resolvable:$true] %s304
          %310 = dma.hbm_to_vmem [thread:$0]  %s303, 7680, %s305, [#allocation3], 128, 128, 8
        $region16: #{net1_forward.1} parent=11 // pred_fallthru
          _
        // Predicated region
        $region17: #{net1_forward.1} parent=11 // pred_check
          %p311 = pneg %p88
        $region18: #{net1_forward.1} parent=11 // pred_check_branch
          %313 = sbr.rel (%p311) target = $region20
        $region19: #{net1_forward.1} parent=11 // pred_region
          _
        $region20: #{net1_forward.1} parent=11 // pred_fallthru
          _
        // Predicated region
        $region21: #{net1_forward.1} parent=11 // pred_check
          %p314 = pneg %p109
        $region22: #{net1_forward.1} parent=11 // pred_check_branch
          %316 = sbr.rel (%p314) target = $region24
        $region23: #{net1_forward.1} parent=11 // pred_region
          _
        $region24: #{net1_forward.1} parent=11 // pred_fallthru
          _
        // Predicated region
        $region25: #{net1_forward.1} parent=11 // pred_check
          %p317 = pneg %p130
        $region26: #{net1_forward.1} parent=11 // pred_check_branch
          %319 = sbr.rel (%p317) target = $region28
        $region27: #{net1_forward.1} parent=11 // pred_region
          _
        $region28: #{net1_forward.1} parent=11 // pred_fallthru
          _
        // Predicated region
        $region29: #{net1_forward.1} parent=11 // pred_check
          %p320 = pneg %p151
        $region30: #{net1_forward.1} parent=11 // pred_check_branch
          %322 = sbr.rel (%p320) target = $region32
        $region31: #{net1_forward.1} parent=11 // pred_region
          %324 = vsyncadd [#allocation5], 0
          %s325 = sshll.u32 %s5, 4
          %s326 = int_to_ptr.hbm [resolvable:$true] %s325
          %s327 = sshll.u32 [#allocation4], 4
          %s328 = int_to_ptr.vmem [resolvable:$true] %s327
          %333 = dma.hbm_to_vmem [thread:$0]  %s326, 5120, %s328, [#allocation5], 64, 64, 4
        $region32: #{net1_forward.1} parent=11 // pred_fallthru
          _
        // Predicated region
        $region33: #{net1_forward.1} parent=11 // pred_check
          %p334 = pneg %p172
        $region34: #{net1_forward.1} parent=11 // pred_check_branch
          %336 = sbr.rel (%p334) target = $region36
        $region35: #{net1_forward.1} parent=11 // pred_region
          _
        $region36: #{net1_forward.1} parent=11 // pred_fallthru
          _
        // Predicated region
        $region37: #{net1_forward.1} parent=11 // pred_check
          %p337 = pneg %p193
        $region38: #{net1_forward.1} parent=11 // pred_check_branch
          %339 = sbr.rel (%p337) target = $region40
        $region39: #{net1_forward.1} parent=11 // pred_region
          %341 = vsyncadd [#allocation5], 0
          %s342 = sshll.u32 %s7, 4
          %s343 = int_to_ptr.hbm [resolvable:$true] %s342
          %s344 = sshll.u32 [#allocation6], 4
          %s345 = int_to_ptr.vmem [resolvable:$true] %s344
          %350 = dma.hbm_to_vmem [thread:$0]  %s343, 1024, %s345, [#allocation5], 64, 64, 4
        $region40: #{net1_forward.1} parent=11 // pred_fallthru
          _
        // Predicated region
        $region41: #{net1_forward.1} parent=11 // pred_check
          %p351 = pneg %p214
        $region42: #{net1_forward.1} parent=11 // pred_check_branch
          %353 = sbr.rel (%p351) target = $region44
        $region43: #{net1_forward.1} parent=11 // pred_region
          _
        $region44: #{net1_forward.1} parent=11 // pred_fallthru
          _
        // Predicated region
        $region45: #{net1_forward.1} parent=11 // pred_check
          %p354 = pneg %p235
        $region46: #{net1_forward.1} parent=11 // pred_check_branch
          %356 = sbr.rel (%p354) target = $region48
        $region47: #{net1_forward.1} parent=11 // pred_region
          %358 = vsyncadd [#allocation8], 0
          %s359 = sshll.u32 %s9, 4
          %s360 = int_to_ptr.hbm [resolvable:$true] %s359
          %s361 = sshll.u32 [#allocation7], 4
          %s362 = int_to_ptr.vmem [resolvable:$true] %s361
          %367 = dma.hbm_to_vmem [thread:$0]  %s360, 1024, %s362, [#allocation8], 64, 64, 4
        $region48: #{net1_forward.1} parent=11 // pred_fallthru
          _
        // Predicated region
        $region49: #{net1_forward.1} parent=11 // pred_check
          %p368 = pneg %p256
        $region50: #{net1_forward.1} parent=11 // pred_check_branch
          %370 = sbr.rel (%p368) target = $region52
        $region51: #{net1_forward.1} parent=11 // pred_region
          _
        $region52: #{net1_forward.1} parent=11 // pred_fallthru
          _
      $region12: #{net1_forward.1} parent=5 // pred_fallthru
        _
      %p371 = scmp.lt.s32.totalorder %s20, 2
      // Predicated region
      $region53: #{net1_forward.1} parent=5 // pred_check
        %p372 = pneg %p371
      $region54: #{net1_forward.1} parent=5 // pred_check_branch
        %374 = sbr.rel (%p372) target = $region56
      $region55: #{net1_forward.1} parent=5 // pred_region
        // Predicated region
        $region57: #{net1_forward.1} parent=55 // pred_check
          %p375 = pneg %p40
        $region58: #{net1_forward.1} parent=55 // pred_check_branch
          %377 = sbr.rel (%p375) target = $region60
        $region59: #{net1_forward.1} parent=55 // pred_region
          %p378 = scmp.lt.s32.totalorder %s20, 1
          %s379 = scalar_select %p378, %s20, 1
          %s380 = smul.addr %s379, 4
          %s381 = smul.addr %s380, 8
          %s382 = scalar_lea.vmem %s0, %s381
        $region60: #{net1_forward.1} parent=55 // pred_fallthru
          _
      $region56: #{net1_forward.1} parent=5 // pred_fallthru
        _
      %p383 = scmp.le.s32.totalorder 1, %s20
      %p384 = scmp.lt.s32.totalorder %s20, 3
      %p385 = pnand %p383, %p384
      %p386 = pneg %p385
      // Predicated region
      $region61: #{net1_forward.1} parent=5 // pred_check
        _
      $region62: #{net1_forward.1} parent=5 // pred_check_branch
        %388 = sbr.rel (%p385) target = $region64
      $region63: #{net1_forward.1} parent=5 // pred_region
        %s389 = ssub.s32 %s20, 1
        // Predicated region
        $region65: #{net1_forward.1} parent=63 // pred_check
          %p390 = pneg %p67
        $region66: #{net1_forward.1} parent=63 // pred_check_branch
          %392 = sbr.rel (%p390) target = $region68
        $region67: #{net1_forward.1} parent=63 // pred_region
          %394 = dma.done [#allocation3], 7680
        $region68: #{net1_forward.1} parent=63 // pred_fallthru
          _
        // Predicated region
        $region69: #{net1_forward.1} parent=63 // pred_check
          %p395 = pneg %p151
        $region70: #{net1_forward.1} parent=63 // pred_check_branch
          %397 = sbr.rel (%p395) target = $region72
        $region71: #{net1_forward.1} parent=63 // pred_region
          %399 = dma.done [#allocation5], 5120
        $region72: #{net1_forward.1} parent=63 // pred_fallthru
          _
        // Predicated region
        $region73: #{net1_forward.1} parent=63 // pred_check
          %p400 = pneg %p193
        $region74: #{net1_forward.1} parent=63 // pred_check_branch
          %402 = sbr.rel (%p400) target = $region76
        $region75: #{net1_forward.1} parent=63 // pred_region
          %404 = dma.done [#allocation5], 1024
        $region76: #{net1_forward.1} parent=63 // pred_fallthru
          _
        // Predicated region
        $region77: #{net1_forward.1} parent=63 // pred_check
          %p405 = pneg %p235
        $region78: #{net1_forward.1} parent=63 // pred_check_branch
          %407 = sbr.rel (%p405) target = $region80
        $region79: #{net1_forward.1} parent=63 // pred_region
          %409 = dma.done [#allocation8], 1024
        $region80: #{net1_forward.1} parent=63 // pred_fallthru
          _
        %p410 = scmp.lt.s32.totalorder %s25, 1
        %s411 = scalar_select %p410, %s25, 1
        %s412 = smul.addr %s411, 4
        %s413 = smul.addr %s412, 8
        %s414 = scalar_lea.vmem %s0, %s413
        %p415 = pneg %p46
        %p416 = pneg %p43
        %p417 = pneg %p67
        %p418 = pneg %p64
        %p419 = pneg %p88
        %p420 = pneg %p85
        %p421 = pneg %p109
        %p422 = pneg %p106
        %p423 = pneg %p130
        %p424 = pneg %p127
        %p425 = pneg %p151
        %p426 = pneg %p148
        %p427 = pneg %p172
        %p428 = pneg %p169
        %p429 = pneg %p193
        %p430 = pneg %p190
        %p431 = pneg %p214
        %p432 = pneg %p211
        %p433 = pneg %p235
        %p434 = pneg %p232
        %p435 = pneg %p256
        %p436 = pneg %p253
        %p437 = pneg %p282
        %p438 = pneg %p279
        %p439 = scmp.lt.s32.totalorder %s25, 1
        %s440 = scalar_select %p439, %s25, 1
        %s441 = smul.addr %s440, 8
        %s442 = scalar_lea.vmem %s11, %s441
        %p443 = scmp.lt.s32.totalorder %s25, 1
        %s444 = scalar_select %p443, %s25, 1
        %s445 = smul.addr %s444, 4
        %s446 = smul.addr %s445, 8
        %s447 = scalar_lea.vmem %s0, %s446
        %p448 = scmp.lt.s32.totalorder %s25, 1
        %s449 = scalar_select %p448, %s25, 1
        %s450 = smul.addr %s449, 8
        %s451 = scalar_lea.vmem %s11, %s450
        %v453 = vld [vmem:[%s447] sm:$0xff]
        %v454 = vld [vmem:[%s447 + $0x8] sm:$0xff]
        %v455 = vld [vmem:[%s447 + $0x10] sm:$0xff]
        %v456 = vld [vmem:[%s447 + $0x18] sm:$0xff]
        %v457 = vpack.c.bf16 %v453, %v453
        %v458 = vpack.c.bf16 %v454, %v454
        %v459 = vpack.c.bf16 %v455, %v455
        %v460 = vpack.c.bf16 %v456, %v456
        %v461 = vld [vmem:[#allocation2] sm:$0xff]
        %v462 = vld [vmem:[#allocation2 + $0x8] sm:$0xff]
        %v463 = vld [vmem:[#allocation2 + $0x10] sm:$0xff]
        %v464 = vld [vmem:[#allocation2 + $0x18] sm:$0xff]
        %v465 = vld [vmem:[#allocation2 + $0x20] sm:$0xff]
        %v466 = vld [vmem:[#allocation2 + $0x28] sm:$0xff]
        %v467 = vld [vmem:[#allocation2 + $0x30] sm:$0xff]
        %v468 = vld [vmem:[#allocation2 + $0x38] sm:$0xff]
        %v469 = vld [vmem:[#allocation2 + $0x40] sm:$0xff]
        %v470 = vld [vmem:[#allocation2 + $0x48] sm:$0xff]
        %v471 = vld [vmem:[#allocation2 + $0x50] sm:$0xff]
        %v472 = vld [vmem:[#allocation2 + $0x58] sm:$0xff]
        %s473 = scalar_lea.vmem [#allocation2], 96
        %v474 = vld [vmem:[%s473] sm:$0xff]
        %v475 = vld [vmem:[%s473 + $0x8] sm:$0xff]
        %v476 = vld [vmem:[%s473 + $0x10] sm:$0xff]
        %v477 = vld [vmem:[%s473 + $0x18] sm:$0xff]
        %v478 = vld [vmem:[%s473 + $0x20] sm:$0xff]
        %v479 = vld [vmem:[%s473 + $0x28] sm:$0xff]
        %v480 = vld [vmem:[%s473 + $0x30] sm:$0xff]
        %v481 = vld [vmem:[%s473 + $0x38] sm:$0xff]
        %v482 = vld [vmem:[%s473 + $0x40] sm:$0xff]
        %v483 = vld [vmem:[%s473 + $0x48] sm:$0xff]
        %v484 = vld [vmem:[%s473 + $0x50] sm:$0xff]
        %v485 = vld [vmem:[%s473 + $0x58] sm:$0xff]
        %v490 = vunpack.c.l.b16 %v457
        %v491 = vunpack.c.l.b16 %v458
        %v492 = vunpack.c.l.b16 %v459
        %v493 = vunpack.c.l.b16 %v460
        %v494 = vpack.c.b16 %v491, %v490
        %v495 = vpack.c.b16 %v493, %v492
        %vm496 = vsmask.f32 7424
        %v498 = vshrl.u32 %v494, 16
        %v500 = vshll.u32 %v494, 16
        %v502 = vrot.slane %v500, 1
        %v503 = vor.u32 %v498, %v502
        %v505 = vshll.u32 %v495, 16
        %v507 = vrot.slane %v505, 1
        %v508 = vsel %vm496, %v503, %v507
        %v509 = vshrl.u32 %v495, 16
        %v511 = vor.u32 %v509, %v507
        %v524 = vunpack.c.l.b16 %v474
        %v525 = vunpack.c.h.b16 %v474
        %v526 = vunpack.c.l.b16 %v475
        %v527 = vunpack.c.h.b16 %v475
        %v528 = vunpack.c.l.b16 %v476
        %v529 = vunpack.c.h.b16 %v476
        %v530 = vunpack.c.l.b16 %v477
        %v531 = vunpack.c.h.b16 %v477
        %v532 = vunpack.c.l.b16 %v478
        %v533 = vunpack.c.h.b16 %v478
        %v534 = vunpack.c.l.b16 %v479
        %v535 = vunpack.c.h.b16 %v479
        %v536 = vunpack.c.l.b16 %v480
        %v537 = vunpack.c.h.b16 %v480
        %v538 = vunpack.c.l.b16 %v481
        %v539 = vunpack.c.h.b16 %v481
        %v540 = vunpack.c.l.b16 %v482
        %v541 = vunpack.c.h.b16 %v482
        %v542 = vunpack.c.l.b16 %v483
        %v543 = vunpack.c.h.b16 %v483
        %v544 = vunpack.c.l.b16 %v484
        %v545 = vunpack.c.h.b16 %v484
        %v546 = vunpack.c.l.b16 %v485
        %v547 = vunpack.c.h.b16 %v485
        %v548 = vpack.c.b16 %v526, %v524
        %v549 = vpack.c.b16 %v527, %v525
        %v550 = vpack.c.b16 %v530, %v528
        %v551 = vpack.c.b16 %v531, %v529
        %v552 = vpack.c.b16 %v534, %v532
        %v553 = vpack.c.b16 %v535, %v533
        %v554 = vpack.c.b16 %v538, %v536
        %v555 = vpack.c.b16 %v539, %v537
        %v556 = vpack.c.b16 %v542, %v540
        %v557 = vpack.c.b16 %v543, %v541
        %v558 = vpack.c.b16 %v546, %v544
        %v559 = vpack.c.b16 %v547, %v545
        %vm572 = vcmask 785408
        %v574 = vsel %vm572, %v508, 0
        %v577 = vsel %vm572, %v511, 0
        %579 = vmatpush.bf16.msra.mxu0 0
        %580 = vmatpush.bf16.msra.mxu0 0
        %581 = vmatpush.bf16.msra.mxu0 %v558
        %582 = vmatpush.bf16.msra.mxu0 %v556
        %583 = vmatpush.bf16.msra.mxu0 %v554
        %584 = vmatpush.bf16.msra.mxu0 %v552
        %585 = vmatpush.bf16.msra.mxu0 %v550
        %586 = vmatpush.bf16.msra.mxu0 %v548
        %587 = vmatmul.bf16.gmra.mxu0 %v574
        %v588 = vpop.f32.mrf.mxu0
        %v589 = vadd.f32 0.0, %v588
        %v590 = vpop.f32.mrf.mxu0
        %v591 = vadd.f32 0.0, %v590
        %592 = vmatmul.bf16.gmra.mxu0 %v577
        %v593 = vpop.f32.mrf.mxu0
        %v594 = vadd.f32 0.0, %v593
        %v595 = vpop.f32.mrf.mxu0
        %v596 = vadd.f32 0.0, %v595
        %597 = vdwg.mxu0
        %598 = vmatpush.bf16.msra.mxu0 0
        %599 = vmatpush.bf16.msra.mxu0 0
        %600 = vmatpush.bf16.msra.mxu0 %v559
        %601 = vmatpush.bf16.msra.mxu0 %v557
        %602 = vmatpush.bf16.msra.mxu0 %v555
        %603 = vmatpush.bf16.msra.mxu0 %v553
        %604 = vmatpush.bf16.msra.mxu0 %v551
        %605 = vmatpush.bf16.msra.mxu0 %v549
        %606 = vmatmul.bf16.gmra.mxu0 %v574
        %v607 = vpop.f32.mrf.mxu0
        %v608 = vadd.f32 0.0, %v607
        %v609 = vpop.f32.mrf.mxu0
        %v610 = vadd.f32 0.0, %v609
        %611 = vmatmul.bf16.gmra.mxu0 %v577
        %v612 = vpop.f32.mrf.mxu0
        %v613 = vadd.f32 0.0, %v612
        %v614 = vpop.f32.mrf.mxu0
        %v615 = vadd.f32 0.0, %v614
        %616 = vdwg.mxu0
        %v629 = vunpack.c.l.b16 %v461
        %v630 = vunpack.c.h.b16 %v461
        %v631 = vunpack.c.l.b16 %v462
        %v632 = vunpack.c.h.b16 %v462
        %v633 = vunpack.c.l.b16 %v463
        %v634 = vunpack.c.h.b16 %v463
        %v635 = vunpack.c.l.b16 %v464
        %v636 = vunpack.c.h.b16 %v464
        %v637 = vunpack.c.l.b16 %v465
        %v638 = vunpack.c.h.b16 %v465
        %v639 = vunpack.c.l.b16 %v466
        %v640 = vunpack.c.h.b16 %v466
        %v641 = vunpack.c.l.b16 %v467
        %v642 = vunpack.c.h.b16 %v467
        %v643 = vunpack.c.l.b16 %v468
        %v644 = vunpack.c.h.b16 %v468
        %v645 = vunpack.c.l.b16 %v469
        %v646 = vunpack.c.h.b16 %v469
        %v647 = vunpack.c.l.b16 %v470
        %v648 = vunpack.c.h.b16 %v470
        %v649 = vunpack.c.l.b16 %v471
        %v650 = vunpack.c.h.b16 %v471
        %v651 = vunpack.c.l.b16 %v472
        %v652 = vunpack.c.h.b16 %v472
        %v653 = vpack.c.b16 %v631, %v629
        %v654 = vpack.c.b16 %v632, %v630
        %v655 = vpack.c.b16 %v635, %v633
        %v656 = vpack.c.b16 %v636, %v634
        %v657 = vpack.c.b16 %v639, %v637
        %v658 = vpack.c.b16 %v640, %v638
        %v659 = vpack.c.b16 %v643, %v641
        %v660 = vpack.c.b16 %v644, %v642
        %v661 = vpack.c.b16 %v647, %v645
        %v662 = vpack.c.b16 %v648, %v646
        %v663 = vpack.c.b16 %v651, %v649
        %v664 = vpack.c.b16 %v652, %v650
        %v677 = vsel %vm572, %v494, 0
        %v679 = vsel %vm572, %v495, 0
        %681 = vmatpush.bf16.msra.mxu0 0
        %682 = vmatpush.bf16.msra.mxu0 0
        %683 = vmatpush.bf16.msra.mxu0 %v663
        %684 = vmatpush.bf16.msra.mxu0 %v661
        %685 = vmatpush.bf16.msra.mxu0 %v659
        %686 = vmatpush.bf16.msra.mxu0 %v657
        %687 = vmatpush.bf16.msra.mxu0 %v655
        %688 = vmatpush.bf16.msra.mxu0 %v653
        %689 = vmatmul.bf16.gmra.mxu0 %v677
        %v690 = vpop.f32.mrf.mxu0
        %v691 = vadd.f32 %v589, %v690
        %v692 = vpop.f32.mrf.mxu0
        %v693 = vadd.f32 %v591, %v692
        %694 = vmatmul.bf16.gmra.mxu0 %v679
        %v695 = vpop.f32.mrf.mxu0
        %v696 = vadd.f32 %v594, %v695
        %v697 = vpop.f32.mrf.mxu0
        %v698 = vadd.f32 %v596, %v697
        %699 = vdwg.mxu0
        %700 = vmatpush.bf16.msra.mxu0 0
        %701 = vmatpush.bf16.msra.mxu0 0
        %702 = vmatpush.bf16.msra.mxu0 %v664
        %703 = vmatpush.bf16.msra.mxu0 %v662
        %704 = vmatpush.bf16.msra.mxu0 %v660
        %705 = vmatpush.bf16.msra.mxu0 %v658
        %706 = vmatpush.bf16.msra.mxu0 %v656
        %707 = vmatpush.bf16.msra.mxu0 %v654
        %708 = vmatmul.bf16.gmra.mxu0 %v677
        %v709 = vpop.f32.mrf.mxu0
        %v710 = vadd.f32 %v608, %v709
        %v711 = vpop.f32.mrf.mxu0
        %v712 = vadd.f32 %v610, %v711
        %713 = vmatmul.bf16.gmra.mxu0 %v679
        %v714 = vpop.f32.mrf.mxu0
        %v715 = vadd.f32 %v613, %v714
        %v716 = vpop.f32.mrf.mxu0
        %v717 = vadd.f32 %v615, %v716
        %718 = vdwg.mxu0
        %s719 = scalar_lea.vmem [#allocation2], 192
        %v720 = vld [vmem:[%s719] sm:$0xff]
        %v721 = vld [vmem:[%s719 + $0x8] sm:$0xff]
        %v722 = vld [vmem:[%s719 + $0x10] sm:$0xff]
        %v723 = vld [vmem:[%s719 + $0x18] sm:$0xff]
        %v724 = vld [vmem:[%s719 + $0x20] sm:$0xff]
        %v725 = vld [vmem:[%s719 + $0x28] sm:$0xff]
        %v726 = vld [vmem:[%s719 + $0x30] sm:$0xff]
        %v727 = vld [vmem:[%s719 + $0x38] sm:$0xff]
        %v728 = vld [vmem:[%s719 + $0x40] sm:$0xff]
        %v729 = vld [vmem:[%s719 + $0x48] sm:$0xff]
        %v730 = vld [vmem:[%s719 + $0x50] sm:$0xff]
        %v731 = vld [vmem:[%s719 + $0x58] sm:$0xff]
        %vm732 = vcmask 1046528
        %v733 = vrot.slane %v494, 1
        %v734 = vrot.slane %v495, 1
        %v735 = vsel %vm732, %v733, %v734
        %v748 = vunpack.c.l.b16 %v720
        %v749 = vunpack.c.h.b16 %v720
        %v750 = vunpack.c.l.b16 %v721
        %v751 = vunpack.c.h.b16 %v721
        %v752 = vunpack.c.l.b16 %v722
        %v753 = vunpack.c.h.b16 %v722
        %v754 = vunpack.c.l.b16 %v723
        %v755 = vunpack.c.h.b16 %v723
        %v756 = vunpack.c.l.b16 %v724
        %v757 = vunpack.c.h.b16 %v724
        %v758 = vunpack.c.l.b16 %v725
        %v759 = vunpack.c.h.b16 %v725
        %v760 = vunpack.c.l.b16 %v726
        %v761 = vunpack.c.h.b16 %v726
        %v762 = vunpack.c.l.b16 %v727
        %v763 = vunpack.c.h.b16 %v727
        %v764 = vunpack.c.l.b16 %v728
        %v765 = vunpack.c.h.b16 %v728
        %v766 = vunpack.c.l.b16 %v729
        %v767 = vunpack.c.h.b16 %v729
        %v768 = vunpack.c.l.b16 %v730
        %v769 = vunpack.c.h.b16 %v730
        %v770 = vunpack.c.l.b16 %v731
        %v771 = vunpack.c.h.b16 %v731
        %v772 = vpack.c.b16 %v750, %v748
        %v773 = vpack.c.b16 %v751, %v749
        %v774 = vpack.c.b16 %v754, %v752
        %v775 = vpack.c.b16 %v755, %v753
        %v776 = vpack.c.b16 %v758, %v756
        %v777 = vpack.c.b16 %v759, %v757
        %v778 = vpack.c.b16 %v762, %v760
        %v779 = vpack.c.b16 %v763, %v761
        %v780 = vpack.c.b16 %v766, %v764
        %v781 = vpack.c.b16 %v767, %v765
        %v782 = vpack.c.b16 %v770, %v768
        %v783 = vpack.c.b16 %v771, %v769
        %v797 = vsel %vm572, %v735, 0
        %v800 = vsel %vm572, %v734, 0
        %802 = vmatpush.bf16.msra.mxu0 0
        %803 = vmatpush.bf16.msra.mxu0 0
        %804 = vmatpush.bf16.msra.mxu0 %v782
        %805 = vmatpush.bf16.msra.mxu0 %v780
        %806 = vmatpush.bf16.msra.mxu0 %v778
        %807 = vmatpush.bf16.msra.mxu0 %v776
        %808 = vmatpush.bf16.msra.mxu0 %v774
        %809 = vmatpush.bf16.msra.mxu0 %v772
        %810 = vmatmul.bf16.gmra.mxu0 %v797
        %v811 = vpop.f32.mrf.mxu0
        %v812 = vadd.f32 0.0, %v811
        %v813 = vpop.f32.mrf.mxu0
        %v814 = vadd.f32 0.0, %v813
        %815 = vmatmul.bf16.gmra.mxu0 %v800
        %v816 = vpop.f32.mrf.mxu0
        %v817 = vadd.f32 0.0, %v816
        %v818 = vpop.f32.mrf.mxu0
        %v819 = vadd.f32 0.0, %v818
        %820 = vdwg.mxu0
        %821 = vmatpush.bf16.msra.mxu0 0
        %822 = vmatpush.bf16.msra.mxu0 0
        %823 = vmatpush.bf16.msra.mxu0 %v783
        %824 = vmatpush.bf16.msra.mxu0 %v781
        %825 = vmatpush.bf16.msra.mxu0 %v779
        %826 = vmatpush.bf16.msra.mxu0 %v777
        %827 = vmatpush.bf16.msra.mxu0 %v775
        %828 = vmatpush.bf16.msra.mxu0 %v773
        %829 = vmatmul.bf16.gmra.mxu0 %v797
        %v830 = vpop.f32.mrf.mxu0
        %v831 = vadd.f32 0.0, %v830
        %v832 = vpop.f32.mrf.mxu0
        %v833 = vadd.f32 0.0, %v832
        %834 = vmatmul.bf16.gmra.mxu0 %v800
        %v835 = vpop.f32.mrf.mxu0
        %v836 = vadd.f32 0.0, %v835
        %v837 = vpop.f32.mrf.mxu0
        %v838 = vadd.f32 0.0, %v837
        %839 = vdwg.mxu0
        %v840 = vadd.f32 %v691, %v812
        %v841 = vadd.f32 %v710, %v831
        %v842 = vadd.f32 %v693, %v814
        %v843 = vadd.f32 %v712, %v833
        %v844 = vadd.f32 %v696, %v817
        %v845 = vadd.f32 %v715, %v836
        %v846 = vadd.f32 %v698, %v819
        %v847 = vadd.f32 %v717, %v838
        %s848 = scalar_lea.vmem [#allocation2], 288
        %v849 = vld [vmem:[%s848] sm:$0xff]
        %v850 = vld [vmem:[%s848 + $0x8] sm:$0xff]
        %v851 = vld [vmem:[%s848 + $0x10] sm:$0xff]
        %v852 = vld [vmem:[%s848 + $0x18] sm:$0xff]
        %v853 = vld [vmem:[%s848 + $0x20] sm:$0xff]
        %v854 = vld [vmem:[%s848 + $0x28] sm:$0xff]
        %v855 = vld [vmem:[%s848 + $0x30] sm:$0xff]
        %v856 = vld [vmem:[%s848 + $0x38] sm:$0xff]
        %v857 = vld [vmem:[%s848 + $0x40] sm:$0xff]
        %v858 = vld [vmem:[%s848 + $0x48] sm:$0xff]
        %v859 = vld [vmem:[%s848 + $0x50] sm:$0xff]
        %v860 = vld [vmem:[%s848 + $0x58] sm:$0xff]
        %vm861 = vsmask.f32 6400
        %v862 = vrot.slane %v498, 1
        %v863 = vrot.slane %v500, 2
        %v864 = vor.u32 %v862, %v863
        %v865 = vrot.slane %v509, 1
        %v866 = vrot.slane %v505, 2
        %v867 = vor.u32 %v865, %v866
        %v868 = vsel %vm861, %v864, %v867
        %v881 = vunpack.c.l.b16 %v849
        %v882 = vunpack.c.h.b16 %v849
        %v883 = vunpack.c.l.b16 %v850
        %v884 = vunpack.c.h.b16 %v850
        %v885 = vunpack.c.l.b16 %v851
        %v886 = vunpack.c.h.b16 %v851
        %v887 = vunpack.c.l.b16 %v852
        %v888 = vunpack.c.h.b16 %v852
        %v889 = vunpack.c.l.b16 %v853
        %v890 = vunpack.c.h.b16 %v853
        %v891 = vunpack.c.l.b16 %v854
        %v892 = vunpack.c.h.b16 %v854
        %v893 = vunpack.c.l.b16 %v855
        %v894 = vunpack.c.h.b16 %v855
        %v895 = vunpack.c.l.b16 %v856
        %v896 = vunpack.c.h.b16 %v856
        %v897 = vunpack.c.l.b16 %v857
        %v898 = vunpack.c.h.b16 %v857
        %v899 = vunpack.c.l.b16 %v858
        %v900 = vunpack.c.h.b16 %v858
        %v901 = vunpack.c.l.b16 %v859
        %v902 = vunpack.c.h.b16 %v859
        %v903 = vunpack.c.l.b16 %v860
        %v904 = vunpack.c.h.b16 %v860
        %v905 = vpack.c.b16 %v883, %v881
        %v906 = vpack.c.b16 %v884, %v882
        %v907 = vpack.c.b16 %v887, %v885
        %v908 = vpack.c.b16 %v888, %v886
        %v909 = vpack.c.b16 %v891, %v889
        %v910 = vpack.c.b16 %v892, %v890
        %v911 = vpack.c.b16 %v895, %v893
        %v912 = vpack.c.b16 %v896, %v894
        %v913 = vpack.c.b16 %v899, %v897
        %v914 = vpack.c.b16 %v900, %v898
        %v915 = vpack.c.b16 %v903, %v901
        %v916 = vpack.c.b16 %v904, %v902
        %v930 = vsel %vm572, %v868, 0
        %v933 = vsel %vm572, %v867, 0
        %935 = vmatpush.bf16.msra.mxu0 0
        %936 = vmatpush.bf16.msra.mxu0 0
        %937 = vmatpush.bf16.msra.mxu0 %v915
        %938 = vmatpush.bf16.msra.mxu0 %v913
        %939 = vmatpush.bf16.msra.mxu0 %v911
        %940 = vmatpush.bf16.msra.mxu0 %v909
        %941 = vmatpush.bf16.msra.mxu0 %v907
        %942 = vmatpush.bf16.msra.mxu0 %v905
        %943 = vmatmul.bf16.gmra.mxu0 %v930
        %v944 = vpop.f32.mrf.mxu0
        %v945 = vadd.f32 0.0, %v944
        %v946 = vpop.f32.mrf.mxu0
        %v947 = vadd.f32 0.0, %v946
        %948 = vmatmul.bf16.gmra.mxu0 %v933
        %v949 = vpop.f32.mrf.mxu0
        %v950 = vadd.f32 0.0, %v949
        %v951 = vpop.f32.mrf.mxu0
        %v952 = vadd.f32 0.0, %v951
        %953 = vdwg.mxu0
        %954 = vmatpush.bf16.msra.mxu0 0
        %955 = vmatpush.bf16.msra.mxu0 0
        %956 = vmatpush.bf16.msra.mxu0 %v916
        %957 = vmatpush.bf16.msra.mxu0 %v914
        %958 = vmatpush.bf16.msra.mxu0 %v912
        %959 = vmatpush.bf16.msra.mxu0 %v910
        %960 = vmatpush.bf16.msra.mxu0 %v908
        %961 = vmatpush.bf16.msra.mxu0 %v906
        %962 = vmatmul.bf16.gmra.mxu0 %v930
        %v963 = vpop.f32.mrf.mxu0
        %v964 = vadd.f32 0.0, %v963
        %v965 = vpop.f32.mrf.mxu0
        %v966 = vadd.f32 0.0, %v965
        %967 = vmatmul.bf16.gmra.mxu0 %v933
        %v968 = vpop.f32.mrf.mxu0
        %v969 = vadd.f32 0.0, %v968
        %v970 = vpop.f32.mrf.mxu0
        %v971 = vadd.f32 0.0, %v970
        %972 = vdwg.mxu0
        %v973 = vadd.f32 %v840, %v945
        %v974 = vadd.f32 %v841, %v964
        %v975 = vadd.f32 %v842, %v947
        %v976 = vadd.f32 %v843, %v966
        %v977 = vadd.f32 %v844, %v950
        %v978 = vadd.f32 %v845, %v969
        %v979 = vadd.f32 %v846, %v952
        %v980 = vadd.f32 %v847, %v971
        %s981 = scalar_lea.vmem [#allocation2], 384
        %v982 = vld [vmem:[%s981] sm:$0xff]
        %v983 = vld [vmem:[%s981 + $0x8] sm:$0xff]
        %v984 = vld [vmem:[%s981 + $0x10] sm:$0xff]
        %v985 = vld [vmem:[%s981 + $0x18] sm:$0xff]
        %v986 = vld [vmem:[%s981 + $0x20] sm:$0xff]
        %v987 = vld [vmem:[%s981 + $0x28] sm:$0xff]
        %v988 = vld [vmem:[%s981 + $0x30] sm:$0xff]
        %v989 = vld [vmem:[%s981 + $0x38] sm:$0xff]
        %v990 = vld [vmem:[%s981 + $0x40] sm:$0xff]
        %v991 = vld [vmem:[%s981 + $0x48] sm:$0xff]
        %v992 = vld [vmem:[%s981 + $0x50] sm:$0xff]
        %v993 = vld [vmem:[%s981 + $0x58] sm:$0xff]
        %vm994 = vcmask 1045504
        %v995 = vrot.slane %v494, 2
        %v996 = vrot.slane %v495, 2
        %v997 = vsel %vm994, %v995, %v996
        %v1010 = vunpack.c.l.b16 %v982
        %v1011 = vunpack.c.h.b16 %v982
        %v1012 = vunpack.c.l.b16 %v983
        %v1013 = vunpack.c.h.b16 %v983
        %v1014 = vunpack.c.l.b16 %v984
        %v1015 = vunpack.c.h.b16 %v984
        %v1016 = vunpack.c.l.b16 %v985
        %v1017 = vunpack.c.h.b16 %v985
        %v1018 = vunpack.c.l.b16 %v986
        %v1019 = vunpack.c.h.b16 %v986
        %v1020 = vunpack.c.l.b16 %v987
        %v1021 = vunpack.c.h.b16 %v987
        %v1022 = vunpack.c.l.b16 %v988
        %v1023 = vunpack.c.h.b16 %v988
        %v1024 = vunpack.c.l.b16 %v989
        %v1025 = vunpack.c.h.b16 %v989
        %v1026 = vunpack.c.l.b16 %v990
        %v1027 = vunpack.c.h.b16 %v990
        %v1028 = vunpack.c.l.b16 %v991
        %v1029 = vunpack.c.h.b16 %v991
        %v1030 = vunpack.c.l.b16 %v992
        %v1031 = vunpack.c.h.b16 %v992
        %v1032 = vunpack.c.l.b16 %v993
        %v1033 = vunpack.c.h.b16 %v993
        %v1034 = vpack.c.b16 %v1012, %v1010
        %v1035 = vpack.c.b16 %v1013, %v1011
        %v1036 = vpack.c.b16 %v1016, %v1014
        %v1037 = vpack.c.b16 %v1017, %v1015
        %v1038 = vpack.c.b16 %v1020, %v1018
        %v1039 = vpack.c.b16 %v1021, %v1019
        %v1040 = vpack.c.b16 %v1024, %v1022
        %v1041 = vpack.c.b16 %v1025, %v1023
        %v1042 = vpack.c.b16 %v1028, %v1026
        %v1043 = vpack.c.b16 %v1029, %v1027
        %v1044 = vpack.c.b16 %v1032, %v1030
        %v1045 = vpack.c.b16 %v1033, %v1031
        %v1059 = vsel %vm572, %v997, 0
        %v1062 = vsel %vm572, %v996, 0
        %1064 = vmatpush.bf16.msra.mxu0 0
        %1065 = vmatpush.bf16.msra.mxu0 0
        %1066 = vmatpush.bf16.msra.mxu0 %v1044
        %1067 = vmatpush.bf16.msra.mxu0 %v1042
        %1068 = vmatpush.bf16.msra.mxu0 %v1040
        %1069 = vmatpush.bf16.msra.mxu0 %v1038
        %1070 = vmatpush.bf16.msra.mxu0 %v1036
        %1071 = vmatpush.bf16.msra.mxu0 %v1034
        %1072 = vmatmul.bf16.gmra.mxu0 %v1059
        %v1073 = vpop.f32.mrf.mxu0
        %v1074 = vadd.f32 0.0, %v1073
        %v1075 = vpop.f32.mrf.mxu0
        %v1076 = vadd.f32 0.0, %v1075
        %1077 = vmatmul.bf16.gmra.mxu0 %v1062
        %v1078 = vpop.f32.mrf.mxu0
        %v1079 = vadd.f32 0.0, %v1078
        %v1080 = vpop.f32.mrf.mxu0
        %v1081 = vadd.f32 0.0, %v1080
        %1082 = vdwg.mxu0
        %1083 = vmatpush.bf16.msra.mxu0 0
        %1084 = vmatpush.bf16.msra.mxu0 0
        %1085 = vmatpush.bf16.msra.mxu0 %v1045
        %1086 = vmatpush.bf16.msra.mxu0 %v1043
        %1087 = vmatpush.bf16.msra.mxu0 %v1041
        %1088 = vmatpush.bf16.msra.mxu0 %v1039
        %1089 = vmatpush.bf16.msra.mxu0 %v1037
        %1090 = vmatpush.bf16.msra.mxu0 %v1035
        %1091 = vmatmul.bf16.gmra.mxu0 %v1059
        %v1092 = vpop.f32.mrf.mxu0
        %v1093 = vadd.f32 0.0, %v1092
        %v1094 = vpop.f32.mrf.mxu0
        %v1095 = vadd.f32 0.0, %v1094
        %1096 = vmatmul.bf16.gmra.mxu0 %v1062
        %v1097 = vpop.f32.mrf.mxu0
        %v1098 = vadd.f32 0.0, %v1097
        %v1099 = vpop.f32.mrf.mxu0
        %v1100 = vadd.f32 0.0, %v1099
        %1101 = vdwg.mxu0
        %v1102 = vadd.f32 %v973, %v1074
        %v1103 = vadd.f32 %v974, %v1093
        %v1104 = vadd.f32 %v975, %v1076
        %v1105 = vadd.f32 %v976, %v1095
        %v1106 = vadd.f32 %v977, %v1079
        %v1107 = vadd.f32 %v978, %v1098
        %v1108 = vadd.f32 %v979, %v1081
        %v1109 = vadd.f32 %v980, %v1100
        %v1110 = vld [vmem:[%s2] sm:$0x3]
        %v1112 = vperm.slane %v1110, 0
        %v1113 = vperm.slane %v1110, 1
        %v1116 = vadd.f32 %v1102, %v1112
        %v1117 = vadd.f32 %v1103, %v1113
        %v1118 = vadd.f32 %v1104, %v1112
        %v1119 = vadd.f32 %v1105, %v1113
        %v1120 = vadd.f32 %v1106, %v1112
        %v1121 = vadd.f32 %v1107, %v1113
        %v1122 = vadd.f32 %v1108, %v1112
        %v1123 = vadd.f32 %v1109, %v1113
        %v1124 = vmax.f32 %v1116, 0.0
        %v1125 = vmax.f32 %v1117, 0.0
        %v1126 = vmax.f32 %v1118, 0.0
        %v1127 = vmax.f32 %v1119, 0.0
        %v1128 = vmax.f32 %v1120, 0.0
        %v1129 = vmax.f32 %v1121, 0.0
        %v1130 = vmax.f32 %v1122, 0.0
        %v1131 = vmax.f32 %v1123, 0.0
        %v1132 = vmax.f32 %v1124, %v1125
        %v1133 = vmax.f32 %v1126, %v1127
        %v1134 = vmax.f32 %v1128, %v1129
        %v1135 = vmax.f32 %v1130, %v1131
        %v1136 = vlaneseq
        %v1137 = vshrl.u32 %v1136, 7
        %v1138 = vadd.s32 %v1137, 8
        %v1139 = vlaneseq
        %v1140 = vand.u32 %v1139, 127
        %v1141 = vmul.u32 %v1137, 2
        %v1142 = vmul.u32 %v1138, 2
        %vm1143 = vcmp.eq.s32.totalorder %v1140, %v1141
        %vm1144 = vcmp.eq.s32.totalorder %v1140, %v1142
        %v1145 = vsel %vm1143, 1, 0
        %v1146 = vsel %vm1144, 1, 0
        %v1147 = vcvt.s32.f32 %v1145
        %v1148 = vcvt.s32.f32 %v1146
        %v1149 = vadd.s32 %v1141, 1
        %v1150 = vadd.s32 %v1142, 1
        %vm1151 = vcmp.eq.s32.totalorder %v1140, %v1149
        %vm1152 = vcmp.eq.s32.totalorder %v1140, %v1150
        %v1153 = vsel %vm1151, 1, 0
        %v1154 = vsel %vm1152, 1, 0
        %v1155 = vcvt.s32.f32 %v1153
        %v1156 = vcvt.s32.f32 %v1154
        %vm1157 = vcmask 228352
        %v1159 = vsel %vm1157, %v1147, 0
        %v1162 = vsel %vm1157, %v1148, 0
        %vm1164 = vcmask 1043456
        %v1166 = vsel %vm1164, %v1135, 0
        %1168 = vmatpush.msra.mxu0 0.0
        %1169 = vmatpush.msra.mxu0 0.0
        %1170 = vmatpush.msra.mxu0 0.0
        %1171 = vmatpush.msra.mxu0 0.0
        %1172 = vmatpush.msra.mxu0 0.0
        %1173 = vmatpush.msra.mxu0 0.0
        %1174 = vmatpush.msra.mxu0 0.0
        %1175 = vmatpush.msra.mxu0 0.0
        %1176 = vmatpush.msra.mxu0 0.0
        %1177 = vmatpush.msra.mxu0 0.0
        %1178 = vmatpush.msra.mxu0 0.0
        %1179 = vmatpush.msra.mxu0 0.0
        %1180 = vmatpush.msra.mxu0 %v1166
        %1181 = vmatpush.msra.mxu0 %v1134
        %1182 = vmatpush.msra.mxu0 %v1133
        %1183 = vmatpush.msra.mxu0 %v1132
        %1184 = vmatmul.f32.gmra.mxu0 %v1159
        %v1185 = vpop.f32.mrf.mxu0
        %v1186 = vadd.f32 0.0, %v1185
        %1187 = vmatmul.f32.gmra.mxu0 %v1162
        %v1188 = vpop.f32.mrf.mxu0
        %v1189 = vadd.f32 0.0, %v1188
        %1190 = vdwg.mxu0
        %v1192 = vsel %vm1157, %v1155, 0
        %v1195 = vsel %vm1157, %v1156, 0
        %1197 = vmatpush.msra.mxu0 0.0
        %1198 = vmatpush.msra.mxu0 0.0
        %1199 = vmatpush.msra.mxu0 0.0
        %1200 = vmatpush.msra.mxu0 0.0
        %1201 = vmatpush.msra.mxu0 0.0
        %1202 = vmatpush.msra.mxu0 0.0
        %1203 = vmatpush.msra.mxu0 0.0
        %1204 = vmatpush.msra.mxu0 0.0
        %1205 = vmatpush.msra.mxu0 0.0
        %1206 = vmatpush.msra.mxu0 0.0
        %1207 = vmatpush.msra.mxu0 0.0
        %1208 = vmatpush.msra.mxu0 0.0
        %1209 = vmatpush.msra.mxu0 %v1166
        %1210 = vmatpush.msra.mxu0 %v1134
        %1211 = vmatpush.msra.mxu0 %v1133
        %1212 = vmatpush.msra.mxu0 %v1132
        %1213 = vmatmul.f32.gmra.mxu0 %v1192
        %v1214 = vpop.f32.mrf.mxu0
        %v1215 = vadd.f32 0.0, %v1214
        %1216 = vmatmul.f32.gmra.mxu0 %v1195
        %v1217 = vpop.f32.mrf.mxu0
        %v1218 = vadd.f32 0.0, %v1217
        %1219 = vdwg.mxu0
        %v1220 = vmax.f32 %v1186, %v1215
        %v1221 = vmax.f32 %v1189, %v1218
        %v1222 = vpack.c.bf16 %v1220, %v1220
        %v1223 = vpack.c.bf16 %v1221, %v1221
        %v1224 = vld [vmem:[%s3] sm:$0xff]
        %v1225 = vld [vmem:[%s3 + $0x8] sm:$0xff]
        %v1226 = vld [vmem:[%s3 + $0x10] sm:$0xff]
        %v1227 = vld [vmem:[%s3 + $0x18] sm:$0xff]
        %v1228 = vld [vmem:[%s3 + $0x20] sm:$0xff]
        %v1229 = vld [vmem:[%s3 + $0x28] sm:$0xff]
        %v1230 = vld [vmem:[%s3 + $0x30] sm:$0xff]
        %v1231 = vld [vmem:[%s3 + $0x38] sm:$0xff]
        %v1232 = vld [vmem:[%s3 + $0x40] sm:$0xff]
        %v1233 = vld [vmem:[%s3 + $0x48] sm:$0xff]
        %v1234 = vld [vmem:[%s3 + $0x50] sm:$0xff]
        %v1235 = vld [vmem:[%s3 + $0x58] sm:$0xff]
        %v1236 = vld [vmem:[%s3 + $0x60] sm:$0xff]
        %v1237 = vld [vmem:[%s3 + $0x68] sm:$0xff]
        %v1238 = vld [vmem:[%s3 + $0x70] sm:$0xff]
        %v1239 = vld [vmem:[%s3 + $0x78] sm:$0xff]
        %s1240 = scalar_lea.vmem %s3, 128
        %v1241 = vld [vmem:[%s1240] sm:$0xff]
        %v1242 = vld [vmem:[%s1240 + $0x8] sm:$0xff]
        %v1243 = vld [vmem:[%s1240 + $0x10] sm:$0xff]
        %v1244 = vld [vmem:[%s1240 + $0x18] sm:$0xff]
        %v1245 = vld [vmem:[%s1240 + $0x20] sm:$0xff]
        %v1246 = vld [vmem:[%s1240 + $0x28] sm:$0xff]
        %v1247 = vld [vmem:[%s1240 + $0x30] sm:$0xff]
        %v1248 = vld [vmem:[%s1240 + $0x38] sm:$0xff]
        %v1249 = vld [vmem:[%s1240 + $0x40] sm:$0xff]
        %v1250 = vld [vmem:[%s1240 + $0x48] sm:$0xff]
        %v1251 = vld [vmem:[%s1240 + $0x50] sm:$0xff]
        %v1252 = vld [vmem:[%s1240 + $0x58] sm:$0xff]
        %v1253 = vld [vmem:[%s1240 + $0x60] sm:$0xff]
        %v1254 = vld [vmem:[%s1240 + $0x68] sm:$0xff]
        %v1255 = vld [vmem:[%s1240 + $0x70] sm:$0xff]
        %v1256 = vld [vmem:[%s1240 + $0x78] sm:$0xff]
        %v1259 = vunpack.c.l.b16 %v1222
        %v1260 = vunpack.c.l.b16 %v1223
        %v1261 = vpack.c.b16 %v1260, %v1259
        %v1263 = vshrl.u32 %v1261, 16
        %v1265 = vshll.u32 %v1261, 16
        %v1267 = vrot.slane %v1265, 1
        %v1268 = vor.u32 %v1263, %v1267
        %v1286 = vunpack.c.l.b16 %v1241
        %v1287 = vunpack.c.h.b16 %v1241
        %v1288 = vunpack.c.l.b16 %v1242
        %v1289 = vunpack.c.h.b16 %v1242
        %v1290 = vunpack.c.l.b16 %v1243
        %v1291 = vunpack.c.h.b16 %v1243
        %v1292 = vunpack.c.l.b16 %v1244
        %v1293 = vunpack.c.h.b16 %v1244
        %v1294 = vunpack.c.l.b16 %v1245
        %v1295 = vunpack.c.h.b16 %v1245
        %v1296 = vunpack.c.l.b16 %v1246
        %v1297 = vunpack.c.h.b16 %v1246
        %v1298 = vunpack.c.l.b16 %v1247
        %v1299 = vunpack.c.h.b16 %v1247
        %v1300 = vunpack.c.l.b16 %v1248
        %v1301 = vunpack.c.h.b16 %v1248
        %v1302 = vunpack.c.l.b16 %v1249
        %v1303 = vunpack.c.h.b16 %v1249
        %v1304 = vunpack.c.l.b16 %v1250
        %v1305 = vunpack.c.h.b16 %v1250
        %v1306 = vunpack.c.l.b16 %v1251
        %v1307 = vunpack.c.h.b16 %v1251
        %v1308 = vunpack.c.l.b16 %v1252
        %v1309 = vunpack.c.h.b16 %v1252
        %v1310 = vunpack.c.l.b16 %v1253
        %v1311 = vunpack.c.h.b16 %v1253
        %v1312 = vunpack.c.l.b16 %v1254
        %v1313 = vunpack.c.h.b16 %v1254
        %v1314 = vunpack.c.l.b16 %v1255
        %v1315 = vunpack.c.h.b16 %v1255
        %v1316 = vunpack.c.l.b16 %v1256
        %v1317 = vunpack.c.h.b16 %v1256
        %v1318 = vpack.c.b16 %v1288, %v1286
        %v1319 = vpack.c.b16 %v1289, %v1287
        %v1320 = vpack.c.b16 %v1292, %v1290
        %v1321 = vpack.c.b16 %v1293, %v1291
        %v1322 = vpack.c.b16 %v1296, %v1294
        %v1323 = vpack.c.b16 %v1297, %v1295
        %v1324 = vpack.c.b16 %v1300, %v1298
        %v1325 = vpack.c.b16 %v1301, %v1299
        %v1326 = vpack.c.b16 %v1304, %v1302
        %v1327 = vpack.c.b16 %v1305, %v1303
        %v1328 = vpack.c.b16 %v1308, %v1306
        %v1329 = vpack.c.b16 %v1309, %v1307
        %v1330 = vpack.c.b16 %v1312, %v1310
        %v1331 = vpack.c.b16 %v1313, %v1311
        %v1332 = vpack.c.b16 %v1316, %v1314
        %v1333 = vpack.c.b16 %v1317, %v1315
        %1350 = vmatpush.bf16.msra.mxu0 %v1332
        %1351 = vmatpush.bf16.msra.mxu0 %v1330
        %1352 = vmatpush.bf16.msra.mxu0 %v1328
        %1353 = vmatpush.bf16.msra.mxu0 %v1326
        %1354 = vmatpush.bf16.msra.mxu0 %v1324
        %1355 = vmatpush.bf16.msra.mxu0 %v1322
        %1356 = vmatpush.bf16.msra.mxu0 %v1320
        %1357 = vmatpush.bf16.msra.mxu0 %v1318
        %1358 = vmatmul.bf16.gmra.mxu0 %v1268
        %v1359 = vpop.f32.mrf.mxu0
        %v1360 = vadd.f32 0.0, %v1359
        %v1361 = vpop.f32.mrf.mxu0
        %v1362 = vadd.f32 0.0, %v1361
        %1363 = vdwg.mxu0
        %1364 = vmatpush.bf16.msra.mxu0 %v1333
        %1365 = vmatpush.bf16.msra.mxu0 %v1331
        %1366 = vmatpush.bf16.msra.mxu0 %v1329
        %1367 = vmatpush.bf16.msra.mxu0 %v1327
        %1368 = vmatpush.bf16.msra.mxu0 %v1325
        %1369 = vmatpush.bf16.msra.mxu0 %v1323
        %1370 = vmatpush.bf16.msra.mxu0 %v1321
        %1371 = vmatpush.bf16.msra.mxu0 %v1319
        %1372 = vmatmul.bf16.gmra.mxu0 %v1268
        %v1373 = vpop.f32.mrf.mxu0
        %v1374 = vadd.f32 0.0, %v1373
        %v1375 = vpop.f32.mrf.mxu0
        %v1376 = vadd.f32 0.0, %v1375
        %1377 = vdwg.mxu0
        %v1395 = vunpack.c.l.b16 %v1224
        %v1396 = vunpack.c.h.b16 %v1224
        %v1397 = vunpack.c.l.b16 %v1225
        %v1398 = vunpack.c.h.b16 %v1225
        %v1399 = vunpack.c.l.b16 %v1226
        %v1400 = vunpack.c.h.b16 %v1226
        %v1401 = vunpack.c.l.b16 %v1227
        %v1402 = vunpack.c.h.b16 %v1227
        %v1403 = vunpack.c.l.b16 %v1228
        %v1404 = vunpack.c.h.b16 %v1228
        %v1405 = vunpack.c.l.b16 %v1229
        %v1406 = vunpack.c.h.b16 %v1229
        %v1407 = vunpack.c.l.b16 %v1230
        %v1408 = vunpack.c.h.b16 %v1230
        %v1409 = vunpack.c.l.b16 %v1231
        %v1410 = vunpack.c.h.b16 %v1231
        %v1411 = vunpack.c.l.b16 %v1232
        %v1412 = vunpack.c.h.b16 %v1232
        %v1413 = vunpack.c.l.b16 %v1233
        %v1414 = vunpack.c.h.b16 %v1233
        %v1415 = vunpack.c.l.b16 %v1234
        %v1416 = vunpack.c.h.b16 %v1234
        %v1417 = vunpack.c.l.b16 %v1235
        %v1418 = vunpack.c.h.b16 %v1235
        %v1419 = vunpack.c.l.b16 %v1236
        %v1420 = vunpack.c.h.b16 %v1236
        %v1421 = vunpack.c.l.b16 %v1237
        %v1422 = vunpack.c.h.b16 %v1237
        %v1423 = vunpack.c.l.b16 %v1238
        %v1424 = vunpack.c.h.b16 %v1238
        %v1425 = vunpack.c.l.b16 %v1239
        %v1426 = vunpack.c.h.b16 %v1239
        %v1427 = vpack.c.b16 %v1397, %v1395
        %v1428 = vpack.c.b16 %v1398, %v1396
        %v1429 = vpack.c.b16 %v1401, %v1399
        %v1430 = vpack.c.b16 %v1402, %v1400
        %v1431 = vpack.c.b16 %v1405, %v1403
        %v1432 = vpack.c.b16 %v1406, %v1404
        %v1433 = vpack.c.b16 %v1409, %v1407
        %v1434 = vpack.c.b16 %v1410, %v1408
        %v1435 = vpack.c.b16 %v1413, %v1411
        %v1436 = vpack.c.b16 %v1414, %v1412
        %v1437 = vpack.c.b16 %v1417, %v1415
        %v1438 = vpack.c.b16 %v1418, %v1416
        %v1439 = vpack.c.b16 %v1421, %v1419
        %v1440 = vpack.c.b16 %v1422, %v1420
        %v1441 = vpack.c.b16 %v1425, %v1423
        %v1442 = vpack.c.b16 %v1426, %v1424
        %1459 = vmatpush.bf16.msra.mxu0 %v1441
        %1460 = vmatpush.bf16.msra.mxu0 %v1439
        %1461 = vmatpush.bf16.msra.mxu0 %v1437
        %1462 = vmatpush.bf16.msra.mxu0 %v1435
        %1463 = vmatpush.bf16.msra.mxu0 %v1433
        %1464 = vmatpush.bf16.msra.mxu0 %v1431
        %1465 = vmatpush.bf16.msra.mxu0 %v1429
        %1466 = vmatpush.bf16.msra.mxu0 %v1427
        %1467 = vmatmul.bf16.gmra.mxu0 %v1261
        %v1468 = vpop.f32.mrf.mxu0
        %v1469 = vadd.f32 %v1360, %v1468
        %v1470 = vpop.f32.mrf.mxu0
        %v1471 = vadd.f32 %v1362, %v1470
        %1472 = vdwg.mxu0
        %1473 = vmatpush.bf16.msra.mxu0 %v1442
        %1474 = vmatpush.bf16.msra.mxu0 %v1440
        %1475 = vmatpush.bf16.msra.mxu0 %v1438
        %1476 = vmatpush.bf16.msra.mxu0 %v1436
        %1477 = vmatpush.bf16.msra.mxu0 %v1434
        %1478 = vmatpush.bf16.msra.mxu0 %v1432
        %1479 = vmatpush.bf16.msra.mxu0 %v1430
        %1480 = vmatpush.bf16.msra.mxu0 %v1428
        %1481 = vmatmul.bf16.gmra.mxu0 %v1261
        %v1482 = vpop.f32.mrf.mxu0
        %v1483 = vadd.f32 %v1374, %v1482
        %v1484 = vpop.f32.mrf.mxu0
        %v1485 = vadd.f32 %v1376, %v1484
        %1486 = vdwg.mxu0
        %s1487 = scalar_lea.vmem %s3, 256
        %v1488 = vld [vmem:[%s1487] sm:$0xff]
        %v1489 = vld [vmem:[%s1487 + $0x8] sm:$0xff]
        %v1490 = vld [vmem:[%s1487 + $0x10] sm:$0xff]
        %v1491 = vld [vmem:[%s1487 + $0x18] sm:$0xff]
        %v1492 = vld [vmem:[%s1487 + $0x20] sm:$0xff]
        %v1493 = vld [vmem:[%s1487 + $0x28] sm:$0xff]
        %v1494 = vld [vmem:[%s1487 + $0x30] sm:$0xff]
        %v1495 = vld [vmem:[%s1487 + $0x38] sm:$0xff]
        %v1496 = vld [vmem:[%s1487 + $0x40] sm:$0xff]
        %v1497 = vld [vmem:[%s1487 + $0x48] sm:$0xff]
        %v1498 = vld [vmem:[%s1487 + $0x50] sm:$0xff]
        %v1499 = vld [vmem:[%s1487 + $0x58] sm:$0xff]
        %v1500 = vld [vmem:[%s1487 + $0x60] sm:$0xff]
        %v1501 = vld [vmem:[%s1487 + $0x68] sm:$0xff]
        %v1502 = vld [vmem:[%s1487 + $0x70] sm:$0xff]
        %v1503 = vld [vmem:[%s1487 + $0x78] sm:$0xff]
        %v1504 = vrot.slane %v1261, 1
        %v1522 = vunpack.c.l.b16 %v1488
        %v1523 = vunpack.c.h.b16 %v1488
        %v1524 = vunpack.c.l.b16 %v1489
        %v1525 = vunpack.c.h.b16 %v1489
        %v1526 = vunpack.c.l.b16 %v1490
        %v1527 = vunpack.c.h.b16 %v1490
        %v1528 = vunpack.c.l.b16 %v1491
        %v1529 = vunpack.c.h.b16 %v1491
        %v1530 = vunpack.c.l.b16 %v1492
        %v1531 = vunpack.c.h.b16 %v1492
        %v1532 = vunpack.c.l.b16 %v1493
        %v1533 = vunpack.c.h.b16 %v1493
        %v1534 = vunpack.c.l.b16 %v1494
        %v1535 = vunpack.c.h.b16 %v1494
        %v1536 = vunpack.c.l.b16 %v1495
        %v1537 = vunpack.c.h.b16 %v1495
        %v1538 = vunpack.c.l.b16 %v1496
        %v1539 = vunpack.c.h.b16 %v1496
        %v1540 = vunpack.c.l.b16 %v1497
        %v1541 = vunpack.c.h.b16 %v1497
        %v1542 = vunpack.c.l.b16 %v1498
        %v1543 = vunpack.c.h.b16 %v1498
        %v1544 = vunpack.c.l.b16 %v1499
        %v1545 = vunpack.c.h.b16 %v1499
        %v1546 = vunpack.c.l.b16 %v1500
        %v1547 = vunpack.c.h.b16 %v1500
        %v1548 = vunpack.c.l.b16 %v1501
        %v1549 = vunpack.c.h.b16 %v1501
        %v1550 = vunpack.c.l.b16 %v1502
        %v1551 = vunpack.c.h.b16 %v1502
        %v1552 = vunpack.c.l.b16 %v1503
        %v1553 = vunpack.c.h.b16 %v1503
        %v1554 = vpack.c.b16 %v1524, %v1522
        %v1555 = vpack.c.b16 %v1525, %v1523
        %v1556 = vpack.c.b16 %v1528, %v1526
        %v1557 = vpack.c.b16 %v1529, %v1527
        %v1558 = vpack.c.b16 %v1532, %v1530
        %v1559 = vpack.c.b16 %v1533, %v1531
        %v1560 = vpack.c.b16 %v1536, %v1534
        %v1561 = vpack.c.b16 %v1537, %v1535
        %v1562 = vpack.c.b16 %v1540, %v1538
        %v1563 = vpack.c.b16 %v1541, %v1539
        %v1564 = vpack.c.b16 %v1544, %v1542
        %v1565 = vpack.c.b16 %v1545, %v1543
        %v1566 = vpack.c.b16 %v1548, %v1546
        %v1567 = vpack.c.b16 %v1549, %v1547
        %v1568 = vpack.c.b16 %v1552, %v1550
        %v1569 = vpack.c.b16 %v1553, %v1551
        %1586 = vmatpush.bf16.msra.mxu0 %v1568
        %1587 = vmatpush.bf16.msra.mxu0 %v1566
        %1588 = vmatpush.bf16.msra.mxu0 %v1564
        %1589 = vmatpush.bf16.msra.mxu0 %v1562
        %1590 = vmatpush.bf16.msra.mxu0 %v1560
        %1591 = vmatpush.bf16.msra.mxu0 %v1558
        %1592 = vmatpush.bf16.msra.mxu0 %v1556
        %1593 = vmatpush.bf16.msra.mxu0 %v1554
        %1594 = vmatmul.bf16.gmra.mxu0 %v1504
        %v1595 = vpop.f32.mrf.mxu0
        %v1596 = vadd.f32 0.0, %v1595
        %v1597 = vpop.f32.mrf.mxu0
        %v1598 = vadd.f32 0.0, %v1597
        %1599 = vdwg.mxu0
        %1600 = vmatpush.bf16.msra.mxu0 %v1569
        %1601 = vmatpush.bf16.msra.mxu0 %v1567
        %1602 = vmatpush.bf16.msra.mxu0 %v1565
        %1603 = vmatpush.bf16.msra.mxu0 %v1563
        %1604 = vmatpush.bf16.msra.mxu0 %v1561
        %1605 = vmatpush.bf16.msra.mxu0 %v1559
        %1606 = vmatpush.bf16.msra.mxu0 %v1557
        %1607 = vmatpush.bf16.msra.mxu0 %v1555
        %1608 = vmatmul.bf16.gmra.mxu0 %v1504
        %v1609 = vpop.f32.mrf.mxu0
        %v1610 = vadd.f32 0.0, %v1609
        %v1611 = vpop.f32.mrf.mxu0
        %v1612 = vadd.f32 0.0, %v1611
        %1613 = vdwg.mxu0
        %v1614 = vadd.f32 %v1469, %v1596
        %v1615 = vadd.f32 %v1483, %v1610
        %v1616 = vadd.f32 %v1471, %v1598
        %v1617 = vadd.f32 %v1485, %v1612
        %s1618 = scalar_lea.vmem %s3, 384
        %v1619 = vld [vmem:[%s1618] sm:$0xff]
        %v1620 = vld [vmem:[%s1618 + $0x8] sm:$0xff]
        %v1621 = vld [vmem:[%s1618 + $0x10] sm:$0xff]
        %v1622 = vld [vmem:[%s1618 + $0x18] sm:$0xff]
        %v1623 = vld [vmem:[%s1618 + $0x20] sm:$0xff]
        %v1624 = vld [vmem:[%s1618 + $0x28] sm:$0xff]
        %v1625 = vld [vmem:[%s1618 + $0x30] sm:$0xff]
        %v1626 = vld [vmem:[%s1618 + $0x38] sm:$0xff]
        %v1627 = vld [vmem:[%s1618 + $0x40] sm:$0xff]
        %v1628 = vld [vmem:[%s1618 + $0x48] sm:$0xff]
        %v1629 = vld [vmem:[%s1618 + $0x50] sm:$0xff]
        %v1630 = vld [vmem:[%s1618 + $0x58] sm:$0xff]
        %v1631 = vld [vmem:[%s1618 + $0x60] sm:$0xff]
        %v1632 = vld [vmem:[%s1618 + $0x68] sm:$0xff]
        %v1633 = vld [vmem:[%s1618 + $0x70] sm:$0xff]
        %v1634 = vld [vmem:[%s1618 + $0x78] sm:$0xff]
        %v1635 = vrot.slane %v1263, 1
        %v1636 = vrot.slane %v1265, 2
        %v1637 = vor.u32 %v1635, %v1636
        %v1655 = vunpack.c.l.b16 %v1619
        %v1656 = vunpack.c.h.b16 %v1619
        %v1657 = vunpack.c.l.b16 %v1620
        %v1658 = vunpack.c.h.b16 %v1620
        %v1659 = vunpack.c.l.b16 %v1621
        %v1660 = vunpack.c.h.b16 %v1621
        %v1661 = vunpack.c.l.b16 %v1622
        %v1662 = vunpack.c.h.b16 %v1622
        %v1663 = vunpack.c.l.b16 %v1623
        %v1664 = vunpack.c.h.b16 %v1623
        %v1665 = vunpack.c.l.b16 %v1624
        %v1666 = vunpack.c.h.b16 %v1624
        %v1667 = vunpack.c.l.b16 %v1625
        %v1668 = vunpack.c.h.b16 %v1625
        %v1669 = vunpack.c.l.b16 %v1626
        %v1670 = vunpack.c.h.b16 %v1626
        %v1671 = vunpack.c.l.b16 %v1627
        %v1672 = vunpack.c.h.b16 %v1627
        %v1673 = vunpack.c.l.b16 %v1628
        %v1674 = vunpack.c.h.b16 %v1628
        %v1675 = vunpack.c.l.b16 %v1629
        %v1676 = vunpack.c.h.b16 %v1629
        %v1677 = vunpack.c.l.b16 %v1630
        %v1678 = vunpack.c.h.b16 %v1630
        %v1679 = vunpack.c.l.b16 %v1631
        %v1680 = vunpack.c.h.b16 %v1631
        %v1681 = vunpack.c.l.b16 %v1632
        %v1682 = vunpack.c.h.b16 %v1632
        %v1683 = vunpack.c.l.b16 %v1633
        %v1684 = vunpack.c.h.b16 %v1633
        %v1685 = vunpack.c.l.b16 %v1634
        %v1686 = vunpack.c.h.b16 %v1634
        %v1687 = vpack.c.b16 %v1657, %v1655
        %v1688 = vpack.c.b16 %v1658, %v1656
        %v1689 = vpack.c.b16 %v1661, %v1659
        %v1690 = vpack.c.b16 %v1662, %v1660
        %v1691 = vpack.c.b16 %v1665, %v1663
        %v1692 = vpack.c.b16 %v1666, %v1664
        %v1693 = vpack.c.b16 %v1669, %v1667
        %v1694 = vpack.c.b16 %v1670, %v1668
        %v1695 = vpack.c.b16 %v1673, %v1671
        %v1696 = vpack.c.b16 %v1674, %v1672
        %v1697 = vpack.c.b16 %v1677, %v1675
        %v1698 = vpack.c.b16 %v1678, %v1676
        %v1699 = vpack.c.b16 %v1681, %v1679
        %v1700 = vpack.c.b16 %v1682, %v1680
        %v1701 = vpack.c.b16 %v1685, %v1683
        %v1702 = vpack.c.b16 %v1686, %v1684
        %1719 = vmatpush.bf16.msra.mxu0 %v1701
        %1720 = vmatpush.bf16.msra.mxu0 %v1699
        %1721 = vmatpush.bf16.msra.mxu0 %v1697
        %1722 = vmatpush.bf16.msra.mxu0 %v1695
        %1723 = vmatpush.bf16.msra.mxu0 %v1693
        %1724 = vmatpush.bf16.msra.mxu0 %v1691
        %1725 = vmatpush.bf16.msra.mxu0 %v1689
        %1726 = vmatpush.bf16.msra.mxu0 %v1687
        %1727 = vmatmul.bf16.gmra.mxu0 %v1637
        %v1728 = vpop.f32.mrf.mxu0
        %v1729 = vadd.f32 0.0, %v1728
        %v1730 = vpop.f32.mrf.mxu0
        %v1731 = vadd.f32 0.0, %v1730
        %1732 = vdwg.mxu0
        %1733 = vmatpush.bf16.msra.mxu0 %v1702
        %1734 = vmatpush.bf16.msra.mxu0 %v1700
        %1735 = vmatpush.bf16.msra.mxu0 %v1698
        %1736 = vmatpush.bf16.msra.mxu0 %v1696
        %1737 = vmatpush.bf16.msra.mxu0 %v1694
        %1738 = vmatpush.bf16.msra.mxu0 %v1692
        %1739 = vmatpush.bf16.msra.mxu0 %v1690
        %1740 = vmatpush.bf16.msra.mxu0 %v1688
        %1741 = vmatmul.bf16.gmra.mxu0 %v1637
        %v1742 = vpop.f32.mrf.mxu0
        %v1743 = vadd.f32 0.0, %v1742
        %v1744 = vpop.f32.mrf.mxu0
        %v1745 = vadd.f32 0.0, %v1744
        %1746 = vdwg.mxu0
        %v1747 = vadd.f32 %v1614, %v1729
        %v1748 = vadd.f32 %v1615, %v1743
        %v1749 = vadd.f32 %v1616, %v1731
        %v1750 = vadd.f32 %v1617, %v1745
        %s1751 = scalar_lea.vmem %s3, 512
        %v1752 = vld [vmem:[%s1751] sm:$0xff]
        %v1753 = vld [vmem:[%s1751 + $0x8] sm:$0xff]
        %v1754 = vld [vmem:[%s1751 + $0x10] sm:$0xff]
        %v1755 = vld [vmem:[%s1751 + $0x18] sm:$0xff]
        %v1756 = vld [vmem:[%s1751 + $0x20] sm:$0xff]
        %v1757 = vld [vmem:[%s1751 + $0x28] sm:$0xff]
        %v1758 = vld [vmem:[%s1751 + $0x30] sm:$0xff]
        %v1759 = vld [vmem:[%s1751 + $0x38] sm:$0xff]
        %v1760 = vld [vmem:[%s1751 + $0x40] sm:$0xff]
        %v1761 = vld [vmem:[%s1751 + $0x48] sm:$0xff]
        %v1762 = vld [vmem:[%s1751 + $0x50] sm:$0xff]
        %v1763 = vld [vmem:[%s1751 + $0x58] sm:$0xff]
        %v1764 = vld [vmem:[%s1751 + $0x60] sm:$0xff]
        %v1765 = vld [vmem:[%s1751 + $0x68] sm:$0xff]
        %v1766 = vld [vmem:[%s1751 + $0x70] sm:$0xff]
        %v1767 = vld [vmem:[%s1751 + $0x78] sm:$0xff]
        %v1768 = vrot.slane %v1261, 2
        %v1786 = vunpack.c.l.b16 %v1752
        %v1787 = vunpack.c.h.b16 %v1752
        %v1788 = vunpack.c.l.b16 %v1753
        %v1789 = vunpack.c.h.b16 %v1753
        %v1790 = vunpack.c.l.b16 %v1754
        %v1791 = vunpack.c.h.b16 %v1754
        %v1792 = vunpack.c.l.b16 %v1755
        %v1793 = vunpack.c.h.b16 %v1755
        %v1794 = vunpack.c.l.b16 %v1756
        %v1795 = vunpack.c.h.b16 %v1756
        %v1796 = vunpack.c.l.b16 %v1757
        %v1797 = vunpack.c.h.b16 %v1757
        %v1798 = vunpack.c.l.b16 %v1758
        %v1799 = vunpack.c.h.b16 %v1758
        %v1800 = vunpack.c.l.b16 %v1759
        %v1801 = vunpack.c.h.b16 %v1759
        %v1802 = vunpack.c.l.b16 %v1760
        %v1803 = vunpack.c.h.b16 %v1760
        %v1804 = vunpack.c.l.b16 %v1761
        %v1805 = vunpack.c.h.b16 %v1761
        %v1806 = vunpack.c.l.b16 %v1762
        %v1807 = vunpack.c.h.b16 %v1762
        %v1808 = vunpack.c.l.b16 %v1763
        %v1809 = vunpack.c.h.b16 %v1763
        %v1810 = vunpack.c.l.b16 %v1764
        %v1811 = vunpack.c.h.b16 %v1764
        %v1812 = vunpack.c.l.b16 %v1765
        %v1813 = vunpack.c.h.b16 %v1765
        %v1814 = vunpack.c.l.b16 %v1766
        %v1815 = vunpack.c.h.b16 %v1766
        %v1816 = vunpack.c.l.b16 %v1767
        %v1817 = vunpack.c.h.b16 %v1767
        %v1818 = vpack.c.b16 %v1788, %v1786
        %v1819 = vpack.c.b16 %v1789, %v1787
        %v1820 = vpack.c.b16 %v1792, %v1790
        %v1821 = vpack.c.b16 %v1793, %v1791
        %v1822 = vpack.c.b16 %v1796, %v1794
        %v1823 = vpack.c.b16 %v1797, %v1795
        %v1824 = vpack.c.b16 %v1800, %v1798
        %v1825 = vpack.c.b16 %v1801, %v1799
        %v1826 = vpack.c.b16 %v1804, %v1802
        %v1827 = vpack.c.b16 %v1805, %v1803
        %v1828 = vpack.c.b16 %v1808, %v1806
        %v1829 = vpack.c.b16 %v1809, %v1807
        %v1830 = vpack.c.b16 %v1812, %v1810
        %v1831 = vpack.c.b16 %v1813, %v1811
        %v1832 = vpack.c.b16 %v1816, %v1814
        %v1833 = vpack.c.b16 %v1817, %v1815
        %1850 = vmatpush.bf16.msra.mxu0 %v1832
        %1851 = vmatpush.bf16.msra.mxu0 %v1830
        %1852 = vmatpush.bf16.msra.mxu0 %v1828
        %1853 = vmatpush.bf16.msra.mxu0 %v1826
        %1854 = vmatpush.bf16.msra.mxu0 %v1824
        %1855 = vmatpush.bf16.msra.mxu0 %v1822
        %1856 = vmatpush.bf16.msra.mxu0 %v1820
        %1857 = vmatpush.bf16.msra.mxu0 %v1818
        %1858 = vmatmul.bf16.gmra.mxu0 %v1768
        %v1859 = vpop.f32.mrf.mxu0
        %v1860 = vadd.f32 0.0, %v1859
        %v1861 = vpop.f32.mrf.mxu0
        %v1862 = vadd.f32 0.0, %v1861
        %1863 = vdwg.mxu0
        %1864 = vmatpush.bf16.msra.mxu0 %v1833
        %1865 = vmatpush.bf16.msra.mxu0 %v1831
        %1866 = vmatpush.bf16.msra.mxu0 %v1829
        %1867 = vmatpush.bf16.msra.mxu0 %v1827
        %1868 = vmatpush.bf16.msra.mxu0 %v1825
        %1869 = vmatpush.bf16.msra.mxu0 %v1823
        %1870 = vmatpush.bf16.msra.mxu0 %v1821
        %1871 = vmatpush.bf16.msra.mxu0 %v1819
        %1872 = vmatmul.bf16.gmra.mxu0 %v1768
        %v1873 = vpop.f32.mrf.mxu0
        %v1874 = vadd.f32 0.0, %v1873
        %v1875 = vpop.f32.mrf.mxu0
        %v1876 = vadd.f32 0.0, %v1875
        %1877 = vdwg.mxu0
        %v1878 = vadd.f32 %v1747, %v1860
        %v1879 = vadd.f32 %v1748, %v1874
        %v1880 = vadd.f32 %v1749, %v1862
        %v1881 = vadd.f32 %v1750, %v1876
        %v1882 = vld [vmem:[%s4] sm:$0x3]
        %v1884 = vperm.slane %v1882, 0
        %v1885 = vperm.slane %v1882, 1
        %v1888 = vadd.f32 %v1878, %v1884
        %v1889 = vadd.f32 %v1879, %v1885
        %v1890 = vadd.f32 %v1880, %v1884
        %v1891 = vadd.f32 %v1881, %v1885
        %v1892 = vmax.f32 %v1888, 0.0
        %v1893 = vmax.f32 %v1889, 0.0
        %v1894 = vmax.f32 %v1890, 0.0
        %v1895 = vmax.f32 %v1891, 0.0
        %v1896 = vmax.f32 %v1892, %v1893
        %v1897 = vmax.f32 %v1894, %v1895
        %vm1898 = vcmask 80896
        %v1899 = vsel %vm1898, %v1147, 0
        %vm1901 = vcmask 1041408
        %v1903 = vsel %vm1901, %v1897, 0
        %1905 = vmatpush.msra.mxu0 0.0
        %1906 = vmatpush.msra.mxu0 0.0
        %1907 = vmatpush.msra.mxu0 0.0
        %1908 = vmatpush.msra.mxu0 0.0
        %1909 = vmatpush.msra.mxu0 0.0
        %1910 = vmatpush.msra.mxu0 0.0
        %1911 = vmatpush.msra.mxu0 0.0
        %1912 = vmatpush.msra.mxu0 0.0
        %1913 = vmatpush.msra.mxu0 0.0
        %1914 = vmatpush.msra.mxu0 0.0
        %1915 = vmatpush.msra.mxu0 0.0
        %1916 = vmatpush.msra.mxu0 0.0
        %1917 = vmatpush.msra.mxu0 0.0
        %1918 = vmatpush.msra.mxu0 0.0
        %1919 = vmatpush.msra.mxu0 %v1903
        %1920 = vmatpush.msra.mxu0 %v1896
        %1921 = vmatmul.f32.gmra.mxu0 %v1899
        %v1922 = vpop.f32.mrf.mxu0
        %v1923 = vadd.f32 0.0, %v1922
        %1924 = vdwg.mxu0
        %v1925 = vsel %vm1898, %v1155, 0
        %1927 = vmatpush.msra.mxu0 0.0
        %1928 = vmatpush.msra.mxu0 0.0
        %1929 = vmatpush.msra.mxu0 0.0
        %1930 = vmatpush.msra.mxu0 0.0
        %1931 = vmatpush.msra.mxu0 0.0
        %1932 = vmatpush.msra.mxu0 0.0
        %1933 = vmatpush.msra.mxu0 0.0
        %1934 = vmatpush.msra.mxu0 0.0
        %1935 = vmatpush.msra.mxu0 0.0
        %1936 = vmatpush.msra.mxu0 0.0
        %1937 = vmatpush.msra.mxu0 0.0
        %1938 = vmatpush.msra.mxu0 0.0
        %1939 = vmatpush.msra.mxu0 0.0
        %1940 = vmatpush.msra.mxu0 0.0
        %1941 = vmatpush.msra.mxu0 %v1903
        %1942 = vmatpush.msra.mxu0 %v1896
        %1943 = vmatmul.f32.gmra.mxu0 %v1925
        %v1944 = vpop.f32.mrf.mxu0
        %v1945 = vadd.f32 0.0, %v1944
        %1946 = vdwg.mxu0
        %v1947 = vmax.f32 %v1923, %v1945
        %v1948 = vpack.c.bf16 %v1947, %v1947
        %v1949 = vld [vmem:[#allocation4] sm:$0xf]
        %v1950 = vld [vmem:[#allocation4 + $0x4] sm:$0xf]
        %v1951 = vld [vmem:[#allocation4 + $0x8] sm:$0xf]
        %v1952 = vld [vmem:[#allocation4 + $0xc] sm:$0xf]
        %v1953 = vld [vmem:[#allocation4 + $0x10] sm:$0xf]
        %v1954 = vld [vmem:[#allocation4 + $0x14] sm:$0xf]
        %v1955 = vld [vmem:[#allocation4 + $0x18] sm:$0xf]
        %v1956 = vld [vmem:[#allocation4 + $0x1c] sm:$0xf]
        %v1957 = vld [vmem:[#allocation4 + $0x20] sm:$0xf]
        %v1958 = vld [vmem:[#allocation4 + $0x24] sm:$0xf]
        %v1959 = vld [vmem:[#allocation4 + $0x28] sm:$0xf]
        %v1960 = vld [vmem:[#allocation4 + $0x2c] sm:$0xf]
        %v1961 = vld [vmem:[#allocation4 + $0x30] sm:$0xf]
        %v1962 = vld [vmem:[#allocation4 + $0x34] sm:$0xf]
        %v1963 = vld [vmem:[#allocation4 + $0x38] sm:$0xf]
        %v1964 = vld [vmem:[#allocation4 + $0x3c] sm:$0xf]
        %s1965 = scalar_lea.vmem [#allocation4], 64
        %v1966 = vld [vmem:[%s1965] sm:$0xf]
        %v1967 = vld [vmem:[%s1965 + $0x4] sm:$0xf]
        %v1968 = vld [vmem:[%s1965 + $0x8] sm:$0xf]
        %v1969 = vld [vmem:[%s1965 + $0xc] sm:$0xf]
        %v1970 = vld [vmem:[%s1965 + $0x10] sm:$0xf]
        %v1971 = vld [vmem:[%s1965 + $0x14] sm:$0xf]
        %v1972 = vld [vmem:[%s1965 + $0x18] sm:$0xf]
        %v1973 = vld [vmem:[%s1965 + $0x1c] sm:$0xf]
        %v1974 = vld [vmem:[%s1965 + $0x20] sm:$0xf]
        %v1975 = vld [vmem:[%s1965 + $0x24] sm:$0xf]
        %v1976 = vld [vmem:[%s1965 + $0x28] sm:$0xf]
        %v1977 = vld [vmem:[%s1965 + $0x2c] sm:$0xf]
        %v1978 = vld [vmem:[%s1965 + $0x30] sm:$0xf]
        %v1979 = vld [vmem:[%s1965 + $0x34] sm:$0xf]
        %v1980 = vld [vmem:[%s1965 + $0x38] sm:$0xf]
        %v1981 = vld [vmem:[%s1965 + $0x3c] sm:$0xf]
        %v1983 = vunpack.c.l.b16 %v1948
        %v1984 = vpack.c.b16 %v1983, %v1983
        %v1986 = vshrl.u32 %v1984, 16
        %v2005 = vunpack.c.l.b16 %v1966
        %v2006 = vunpack.c.l.b16 %v1967
        %v2007 = vunpack.c.l.b16 %v1968
        %v2008 = vunpack.c.l.b16 %v1969
        %v2009 = vunpack.c.l.b16 %v1970
        %v2010 = vunpack.c.l.b16 %v1971
        %v2011 = vunpack.c.l.b16 %v1972
        %v2012 = vunpack.c.l.b16 %v1973
        %v2013 = vunpack.c.l.b16 %v1974
        %v2014 = vunpack.c.l.b16 %v1975
        %v2015 = vunpack.c.l.b16 %v1976
        %v2016 = vunpack.c.l.b16 %v1977
        %v2017 = vunpack.c.l.b16 %v1978
        %v2018 = vunpack.c.l.b16 %v1979
        %v2019 = vunpack.c.l.b16 %v1980
        %v2020 = vunpack.c.l.b16 %v1981
        %v2021 = vpack.c.b16 %v2006, %v2005
        %v2022 = vpack.c.b16 %v2008, %v2007
        %v2023 = vpack.c.b16 %v2010, %v2009
        %v2024 = vpack.c.b16 %v2012, %v2011
        %v2025 = vpack.c.b16 %v2014, %v2013
        %v2026 = vpack.c.b16 %v2016, %v2015
        %v2027 = vpack.c.b16 %v2018, %v2017
        %v2028 = vpack.c.b16 %v2020, %v2019
        %2037 = vmatpush.bf16.msra.mxu0 %v2028
        %2038 = vmatpush.bf16.msra.mxu0 %v2027
        %2039 = vmatpush.bf16.msra.mxu0 %v2026
        %2040 = vmatpush.bf16.msra.mxu0 %v2025
        %2041 = vmatpush.bf16.msra.mxu0 %v2024
        %2042 = vmatpush.bf16.msra.mxu0 %v2023
        %2043 = vmatpush.bf16.msra.mxu0 %v2022
        %2044 = vmatpush.bf16.msra.mxu0 %v2021
        %2045 = vmatmul.bf16.gmra.mxu0 %v1986
        %v2046 = vpop.f32.mrf.mxu0
        %v2047 = vadd.f32 0.0, %v2046
        %v2048 = vpop.f32.mrf.mxu0
        %2049 = vdwg.mxu0
        %v2066 = vunpack.c.l.b16 %v1949
        %v2067 = vunpack.c.l.b16 %v1950
        %v2068 = vunpack.c.l.b16 %v1951
        %v2069 = vunpack.c.l.b16 %v1952
        %v2070 = vunpack.c.l.b16 %v1953
        %v2071 = vunpack.c.l.b16 %v1954
        %v2072 = vunpack.c.l.b16 %v1955
        %v2073 = vunpack.c.l.b16 %v1956
        %v2074 = vunpack.c.l.b16 %v1957
        %v2075 = vunpack.c.l.b16 %v1958
        %v2076 = vunpack.c.l.b16 %v1959
        %v2077 = vunpack.c.l.b16 %v1960
        %v2078 = vunpack.c.l.b16 %v1961
        %v2079 = vunpack.c.l.b16 %v1962
        %v2080 = vunpack.c.l.b16 %v1963
        %v2081 = vunpack.c.l.b16 %v1964
        %v2082 = vpack.c.b16 %v2067, %v2066
        %v2083 = vpack.c.b16 %v2069, %v2068
        %v2084 = vpack.c.b16 %v2071, %v2070
        %v2085 = vpack.c.b16 %v2073, %v2072
        %v2086 = vpack.c.b16 %v2075, %v2074
        %v2087 = vpack.c.b16 %v2077, %v2076
        %v2088 = vpack.c.b16 %v2079, %v2078
        %v2089 = vpack.c.b16 %v2081, %v2080
        %2098 = vmatpush.bf16.msra.mxu0 %v2089
        %2099 = vmatpush.bf16.msra.mxu0 %v2088
        %2100 = vmatpush.bf16.msra.mxu0 %v2087
        %2101 = vmatpush.bf16.msra.mxu0 %v2086
        %2102 = vmatpush.bf16.msra.mxu0 %v2085
        %2103 = vmatpush.bf16.msra.mxu0 %v2084
        %2104 = vmatpush.bf16.msra.mxu0 %v2083
        %2105 = vmatpush.bf16.msra.mxu0 %v2082
        %2106 = vmatmul.bf16.gmra.mxu0 %v1948
        %v2107 = vpop.f32.mrf.mxu0
        %v2108 = vadd.f32 %v2047, %v2107
        %v2109 = vpop.f32.mrf.mxu0
        %2110 = vdwg.mxu0
        %s2111 = scalar_lea.vmem [#allocation4], 128
        %v2112 = vld [vmem:[%s2111] sm:$0xf]
        %v2113 = vld [vmem:[%s2111 + $0x4] sm:$0xf]
        %v2114 = vld [vmem:[%s2111 + $0x8] sm:$0xf]
        %v2115 = vld [vmem:[%s2111 + $0xc] sm:$0xf]
        %v2116 = vld [vmem:[%s2111 + $0x10] sm:$0xf]
        %v2117 = vld [vmem:[%s2111 + $0x14] sm:$0xf]
        %v2118 = vld [vmem:[%s2111 + $0x18] sm:$0xf]
        %v2119 = vld [vmem:[%s2111 + $0x1c] sm:$0xf]
        %v2120 = vld [vmem:[%s2111 + $0x20] sm:$0xf]
        %v2121 = vld [vmem:[%s2111 + $0x24] sm:$0xf]
        %v2122 = vld [vmem:[%s2111 + $0x28] sm:$0xf]
        %v2123 = vld [vmem:[%s2111 + $0x2c] sm:$0xf]
        %v2124 = vld [vmem:[%s2111 + $0x30] sm:$0xf]
        %v2125 = vld [vmem:[%s2111 + $0x34] sm:$0xf]
        %v2126 = vld [vmem:[%s2111 + $0x38] sm:$0xf]
        %v2127 = vld [vmem:[%s2111 + $0x3c] sm:$0xf]
        %v2128 = vrot.slane %v1984, 1
        %v2146 = vunpack.c.l.b16 %v2112
        %v2147 = vunpack.c.l.b16 %v2113
        %v2148 = vunpack.c.l.b16 %v2114
        %v2149 = vunpack.c.l.b16 %v2115
        %v2150 = vunpack.c.l.b16 %v2116
        %v2151 = vunpack.c.l.b16 %v2117
        %v2152 = vunpack.c.l.b16 %v2118
        %v2153 = vunpack.c.l.b16 %v2119
        %v2154 = vunpack.c.l.b16 %v2120
        %v2155 = vunpack.c.l.b16 %v2121
        %v2156 = vunpack.c.l.b16 %v2122
        %v2157 = vunpack.c.l.b16 %v2123
        %v2158 = vunpack.c.l.b16 %v2124
        %v2159 = vunpack.c.l.b16 %v2125
        %v2160 = vunpack.c.l.b16 %v2126
        %v2161 = vunpack.c.l.b16 %v2127
        %v2162 = vpack.c.b16 %v2147, %v2146
        %v2163 = vpack.c.b16 %v2149, %v2148
        %v2164 = vpack.c.b16 %v2151, %v2150
        %v2165 = vpack.c.b16 %v2153, %v2152
        %v2166 = vpack.c.b16 %v2155, %v2154
        %v2167 = vpack.c.b16 %v2157, %v2156
        %v2168 = vpack.c.b16 %v2159, %v2158
        %v2169 = vpack.c.b16 %v2161, %v2160
        %2178 = vmatpush.bf16.msra.mxu0 %v2169
        %2179 = vmatpush.bf16.msra.mxu0 %v2168
        %2180 = vmatpush.bf16.msra.mxu0 %v2167
        %2181 = vmatpush.bf16.msra.mxu0 %v2166
        %2182 = vmatpush.bf16.msra.mxu0 %v2165
        %2183 = vmatpush.bf16.msra.mxu0 %v2164
        %2184 = vmatpush.bf16.msra.mxu0 %v2163
        %2185 = vmatpush.bf16.msra.mxu0 %v2162
        %2186 = vmatmul.bf16.gmra.mxu0 %v2128
        %v2187 = vpop.f32.mrf.mxu0
        %v2188 = vadd.f32 0.0, %v2187
        %v2189 = vpop.f32.mrf.mxu0
        %2190 = vdwg.mxu0
        %v2191 = vadd.f32 %v2108, %v2188
        %s2192 = scalar_lea.vmem [#allocation4], 192
        %v2193 = vld [vmem:[%s2192] sm:$0xf]
        %v2194 = vld [vmem:[%s2192 + $0x4] sm:$0xf]
        %v2195 = vld [vmem:[%s2192 + $0x8] sm:$0xf]
        %v2196 = vld [vmem:[%s2192 + $0xc] sm:$0xf]
        %v2197 = vld [vmem:[%s2192 + $0x10] sm:$0xf]
        %v2198 = vld [vmem:[%s2192 + $0x14] sm:$0xf]
        %v2199 = vld [vmem:[%s2192 + $0x18] sm:$0xf]
        %v2200 = vld [vmem:[%s2192 + $0x1c] sm:$0xf]
        %v2201 = vld [vmem:[%s2192 + $0x20] sm:$0xf]
        %v2202 = vld [vmem:[%s2192 + $0x24] sm:$0xf]
        %v2203 = vld [vmem:[%s2192 + $0x28] sm:$0xf]
        %v2204 = vld [vmem:[%s2192 + $0x2c] sm:$0xf]
        %v2205 = vld [vmem:[%s2192 + $0x30] sm:$0xf]
        %v2206 = vld [vmem:[%s2192 + $0x34] sm:$0xf]
        %v2207 = vld [vmem:[%s2192 + $0x38] sm:$0xf]
        %v2208 = vld [vmem:[%s2192 + $0x3c] sm:$0xf]
        %v2209 = vrot.slane %v1986, 1
        %v2227 = vunpack.c.l.b16 %v2193
        %v2228 = vunpack.c.l.b16 %v2194
        %v2229 = vunpack.c.l.b16 %v2195
        %v2230 = vunpack.c.l.b16 %v2196
        %v2231 = vunpack.c.l.b16 %v2197
        %v2232 = vunpack.c.l.b16 %v2198
        %v2233 = vunpack.c.l.b16 %v2199
        %v2234 = vunpack.c.l.b16 %v2200
        %v2235 = vunpack.c.l.b16 %v2201
        %v2236 = vunpack.c.l.b16 %v2202
        %v2237 = vunpack.c.l.b16 %v2203
        %v2238 = vunpack.c.l.b16 %v2204
        %v2239 = vunpack.c.l.b16 %v2205
        %v2240 = vunpack.c.l.b16 %v2206
        %v2241 = vunpack.c.l.b16 %v2207
        %v2242 = vunpack.c.l.b16 %v2208
        %v2243 = vpack.c.b16 %v2228, %v2227
        %v2244 = vpack.c.b16 %v2230, %v2229
        %v2245 = vpack.c.b16 %v2232, %v2231
        %v2246 = vpack.c.b16 %v2234, %v2233
        %v2247 = vpack.c.b16 %v2236, %v2235
        %v2248 = vpack.c.b16 %v2238, %v2237
        %v2249 = vpack.c.b16 %v2240, %v2239
        %v2250 = vpack.c.b16 %v2242, %v2241
        %2259 = vmatpush.bf16.msra.mxu0 %v2250
        %2260 = vmatpush.bf16.msra.mxu0 %v2249
        %2261 = vmatpush.bf16.msra.mxu0 %v2248
        %2262 = vmatpush.bf16.msra.mxu0 %v2247
        %2263 = vmatpush.bf16.msra.mxu0 %v2246
        %2264 = vmatpush.bf16.msra.mxu0 %v2245
        %2265 = vmatpush.bf16.msra.mxu0 %v2244
        %2266 = vmatpush.bf16.msra.mxu0 %v2243
        %2267 = vmatmul.bf16.gmra.mxu0 %v2209
        %v2268 = vpop.f32.mrf.mxu0
        %v2269 = vadd.f32 0.0, %v2268
        %v2270 = vpop.f32.mrf.mxu0
        %2271 = vdwg.mxu0
        %v2272 = vadd.f32 %v2191, %v2269
        %s2273 = scalar_lea.vmem [#allocation4], 256
        %v2274 = vld [vmem:[%s2273] sm:$0xf]
        %v2275 = vld [vmem:[%s2273 + $0x4] sm:$0xf]
        %v2276 = vld [vmem:[%s2273 + $0x8] sm:$0xf]
        %v2277 = vld [vmem:[%s2273 + $0xc] sm:$0xf]
        %v2278 = vld [vmem:[%s2273 + $0x10] sm:$0xf]
        %v2279 = vld [vmem:[%s2273 + $0x14] sm:$0xf]
        %v2280 = vld [vmem:[%s2273 + $0x18] sm:$0xf]
        %v2281 = vld [vmem:[%s2273 + $0x1c] sm:$0xf]
        %v2282 = vld [vmem:[%s2273 + $0x20] sm:$0xf]
        %v2283 = vld [vmem:[%s2273 + $0x24] sm:$0xf]
        %v2284 = vld [vmem:[%s2273 + $0x28] sm:$0xf]
        %v2285 = vld [vmem:[%s2273 + $0x2c] sm:$0xf]
        %v2286 = vld [vmem:[%s2273 + $0x30] sm:$0xf]
        %v2287 = vld [vmem:[%s2273 + $0x34] sm:$0xf]
        %v2288 = vld [vmem:[%s2273 + $0x38] sm:$0xf]
        %v2289 = vld [vmem:[%s2273 + $0x3c] sm:$0xf]
        %v2290 = vrot.slane %v1984, 2
        %v2308 = vunpack.c.l.b16 %v2274
        %v2309 = vunpack.c.l.b16 %v2275
        %v2310 = vunpack.c.l.b16 %v2276
        %v2311 = vunpack.c.l.b16 %v2277
        %v2312 = vunpack.c.l.b16 %v2278
        %v2313 = vunpack.c.l.b16 %v2279
        %v2314 = vunpack.c.l.b16 %v2280
        %v2315 = vunpack.c.l.b16 %v2281
        %v2316 = vunpack.c.l.b16 %v2282
        %v2317 = vunpack.c.l.b16 %v2283
        %v2318 = vunpack.c.l.b16 %v2284
        %v2319 = vunpack.c.l.b16 %v2285
        %v2320 = vunpack.c.l.b16 %v2286
        %v2321 = vunpack.c.l.b16 %v2287
        %v2322 = vunpack.c.l.b16 %v2288
        %v2323 = vunpack.c.l.b16 %v2289
        %v2324 = vpack.c.b16 %v2309, %v2308
        %v2325 = vpack.c.b16 %v2311, %v2310
        %v2326 = vpack.c.b16 %v2313, %v2312
        %v2327 = vpack.c.b16 %v2315, %v2314
        %v2328 = vpack.c.b16 %v2317, %v2316
        %v2329 = vpack.c.b16 %v2319, %v2318
        %v2330 = vpack.c.b16 %v2321, %v2320
        %v2331 = vpack.c.b16 %v2323, %v2322
        %2340 = vmatpush.bf16.msra.mxu0 %v2331
        %2341 = vmatpush.bf16.msra.mxu0 %v2330
        %2342 = vmatpush.bf16.msra.mxu0 %v2329
        %2343 = vmatpush.bf16.msra.mxu0 %v2328
        %2344 = vmatpush.bf16.msra.mxu0 %v2327
        %2345 = vmatpush.bf16.msra.mxu0 %v2326
        %2346 = vmatpush.bf16.msra.mxu0 %v2325
        %2347 = vmatpush.bf16.msra.mxu0 %v2324
        %2348 = vmatmul.bf16.gmra.mxu0 %v2290
        %v2349 = vpop.f32.mrf.mxu0
        %v2350 = vadd.f32 0.0, %v2349
        %v2351 = vpop.f32.mrf.mxu0
        %2352 = vdwg.mxu0
        %v2353 = vadd.f32 %v2272, %v2350
        %v2354 = vld [vmem:[%s6] sm:$0x1]
        %v2355 = vadd.f32 %v2353, %v2354
        %v2356 = vmax.f32 %v2355, 0.0
        %v2357 = vpack.c.bf16 %v2356, %v2356
        %v2358 = vld [vmem:[#allocation6] sm:$0xf]
        %v2359 = vld [vmem:[#allocation6 + $0x4] sm:$0xf]
        %v2360 = vld [vmem:[#allocation6 + $0x8] sm:$0xf]
        %v2361 = vld [vmem:[#allocation6 + $0xc] sm:$0xf]
        %v2362 = vld [vmem:[#allocation6 + $0x10] sm:$0xf]
        %v2363 = vld [vmem:[#allocation6 + $0x14] sm:$0xf]
        %v2364 = vld [vmem:[#allocation6 + $0x18] sm:$0xf]
        %v2365 = vld [vmem:[#allocation6 + $0x1c] sm:$0xf]
        %v2366 = vld [vmem:[#allocation6 + $0x20] sm:$0xf]
        %v2367 = vld [vmem:[#allocation6 + $0x24] sm:$0xf]
        %v2368 = vld [vmem:[#allocation6 + $0x28] sm:$0xf]
        %v2369 = vld [vmem:[#allocation6 + $0x2c] sm:$0xf]
        %v2370 = vld [vmem:[#allocation6 + $0x30] sm:$0xf]
        %v2371 = vld [vmem:[#allocation6 + $0x34] sm:$0xf]
        %v2372 = vld [vmem:[#allocation6 + $0x38] sm:$0xf]
        %v2373 = vld [vmem:[#allocation6 + $0x3c] sm:$0xf]
        %v2374 = vld [vmem:[%s8] sm:$0x1]
        %v2391 = vunpack.c.l.b16 %v2358
        %v2392 = vunpack.c.l.b16 %v2359
        %v2393 = vunpack.c.l.b16 %v2360
        %v2394 = vunpack.c.l.b16 %v2361
        %v2395 = vunpack.c.l.b16 %v2362
        %v2396 = vunpack.c.l.b16 %v2363
        %v2397 = vunpack.c.l.b16 %v2364
        %v2398 = vunpack.c.l.b16 %v2365
        %v2399 = vunpack.c.l.b16 %v2366
        %v2400 = vunpack.c.l.b16 %v2367
        %v2401 = vunpack.c.l.b16 %v2368
        %v2402 = vunpack.c.l.b16 %v2369
        %v2403 = vunpack.c.l.b16 %v2370
        %v2404 = vunpack.c.l.b16 %v2371
        %v2405 = vunpack.c.l.b16 %v2372
        %v2406 = vunpack.c.l.b16 %v2373
        %v2407 = vpack.c.b16 %v2392, %v2391
        %v2408 = vpack.c.b16 %v2394, %v2393
        %v2409 = vpack.c.b16 %v2396, %v2395
        %v2410 = vpack.c.b16 %v2398, %v2397
        %v2411 = vpack.c.b16 %v2400, %v2399
        %v2412 = vpack.c.b16 %v2402, %v2401
        %v2413 = vpack.c.b16 %v2404, %v2403
        %v2414 = vpack.c.b16 %v2406, %v2405
        %2423 = vmatpush.bf16.msra.mxu0 %v2414
        %2424 = vmatpush.bf16.msra.mxu0 %v2413
        %2425 = vmatpush.bf16.msra.mxu0 %v2412
        %2426 = vmatpush.bf16.msra.mxu0 %v2411
        %2427 = vmatpush.bf16.msra.mxu0 %v2410
        %2428 = vmatpush.bf16.msra.mxu0 %v2409
        %2429 = vmatpush.bf16.msra.mxu0 %v2408
        %2430 = vmatpush.bf16.msra.mxu0 %v2407
        %2431 = vmatmul.bf16.gmra.mxu0 %v2357
        %v2432 = vpop.f32.mrf.mxu0
        %v2433 = vadd.f32 %v2374, %v2432
        %v2434 = vpop.f32.mrf.mxu0
        %2435 = vdwg.mxu0
        %v2436 = vmax.f32 %v2433, 0.0
        %v2437 = vpack.c.bf16 %v2436, %v2436
        %v2438 = vld [vmem:[#allocation7] sm:$0xf]
        %v2439 = vld [vmem:[#allocation7 + $0x4] sm:$0xf]
        %v2440 = vld [vmem:[#allocation7 + $0x8] sm:$0xf]
        %v2441 = vld [vmem:[#allocation7 + $0xc] sm:$0xf]
        %v2442 = vld [vmem:[#allocation7 + $0x10] sm:$0xf]
        %v2443 = vld [vmem:[#allocation7 + $0x14] sm:$0xf]
        %v2444 = vld [vmem:[#allocation7 + $0x18] sm:$0xf]
        %v2445 = vld [vmem:[#allocation7 + $0x1c] sm:$0xf]
        %v2446 = vld [vmem:[#allocation7 + $0x20] sm:$0xf]
        %v2447 = vld [vmem:[#allocation7 + $0x24] sm:$0xf]
        %v2448 = vld [vmem:[#allocation7 + $0x28] sm:$0xf]
        %v2449 = vld [vmem:[#allocation7 + $0x2c] sm:$0xf]
        %v2450 = vld [vmem:[#allocation7 + $0x30] sm:$0xf]
        %v2451 = vld [vmem:[#allocation7 + $0x34] sm:$0xf]
        %v2452 = vld [vmem:[#allocation7 + $0x38] sm:$0xf]
        %v2453 = vld [vmem:[#allocation7 + $0x3c] sm:$0xf]
        %v2454 = vld [vmem:[%s10] sm:$0x1]
        %v2471 = vunpack.c.l.b16 %v2438
        %v2472 = vunpack.c.l.b16 %v2439
        %v2473 = vunpack.c.l.b16 %v2440
        %v2474 = vunpack.c.l.b16 %v2441
        %v2475 = vunpack.c.l.b16 %v2442
        %v2476 = vunpack.c.l.b16 %v2443
        %v2477 = vunpack.c.l.b16 %v2444
        %v2478 = vunpack.c.l.b16 %v2445
        %v2479 = vunpack.c.l.b16 %v2446
        %v2480 = vunpack.c.l.b16 %v2447
        %v2481 = vunpack.c.l.b16 %v2448
        %v2482 = vunpack.c.l.b16 %v2449
        %v2483 = vunpack.c.l.b16 %v2450
        %v2484 = vunpack.c.l.b16 %v2451
        %v2485 = vunpack.c.l.b16 %v2452
        %v2486 = vunpack.c.l.b16 %v2453
        %v2487 = vpack.c.b16 %v2472, %v2471
        %v2488 = vpack.c.b16 %v2474, %v2473
        %v2489 = vpack.c.b16 %v2476, %v2475
        %v2490 = vpack.c.b16 %v2478, %v2477
        %v2491 = vpack.c.b16 %v2480, %v2479
        %v2492 = vpack.c.b16 %v2482, %v2481
        %v2493 = vpack.c.b16 %v2484, %v2483
        %v2494 = vpack.c.b16 %v2486, %v2485
        %2503 = vmatpush.bf16.msra.mxu0 %v2494
        %2504 = vmatpush.bf16.msra.mxu0 %v2493
        %2505 = vmatpush.bf16.msra.mxu0 %v2492
        %2506 = vmatpush.bf16.msra.mxu0 %v2491
        %2507 = vmatpush.bf16.msra.mxu0 %v2490
        %2508 = vmatpush.bf16.msra.mxu0 %v2489
        %2509 = vmatpush.bf16.msra.mxu0 %v2488
        %2510 = vmatpush.bf16.msra.mxu0 %v2487
        %2511 = vmatmul.bf16.gmra.mxu0 %v2437
        %v2512 = vpop.f32.mrf.mxu0
        %v2513 = vadd.f32 %v2454, %v2512
        %v2514 = vpop.f32.mrf.mxu0
        %2515 = vdwg.mxu0
        %v2516 = vperm.slane %v2513, 0
        %2517 = vst [vmem:[%s451] sm:$0xff] %v2516
        %p2518 = scmp.lt.s32.totalorder %s25, 1
        %s2519 = scalar_select %p2518, %s25, 1
        %s2520 = smul.addr %s2519, 8
        %s2521 = scalar_lea.vmem %s11, %s2520
        // Predicated region
        $region81: #{net1_forward.1} parent=63 // pred_check
          %p2522 = pneg %p279
        $region82: #{net1_forward.1} parent=63 // pred_check_branch
          %2524 = sbr.rel (%p2522) target = $region84
        $region83: #{net1_forward.1} parent=63 // pred_region
          _
        $region84: #{net1_forward.1} parent=63 // pred_fallthru
          _
      $region64: #{net1_forward.1} parent=5 // pred_fallthru
        _
      %p2525 = scmp.le.s32.totalorder 2, %s20
      // Predicated region
      $region85: #{net1_forward.1} parent=5 // pred_check
        %p2526 = pneg %p2525
      $region86: #{net1_forward.1} parent=5 // pred_check_branch
        %2528 = sbr.rel (%p2526) target = $region88
      $region87: #{net1_forward.1} parent=5 // pred_region
        %s2529 = ssub.s32 %s20, 2
        // Predicated region
        $region89: #{net1_forward.1} parent=87 // pred_check
          %p2530 = pneg %p285
        $region90: #{net1_forward.1} parent=87 // pred_check_branch
          %2532 = sbr.rel (%p2530) target = $region92
        $region91: #{net1_forward.1} parent=87 // pred_region
          %p2533 = scmp.lt.s32.totalorder %s26, 1
          %s2534 = scalar_select %p2533, %s26, 1
          %s2535 = smul.addr %s2534, 8
          %s2536 = scalar_lea.vmem %s11, %s2535
        $region92: #{net1_forward.1} parent=87 // pred_fallthru
          _
      $region88: #{net1_forward.1} parent=5 // pred_fallthru
        _
    $region6: #{net1_forward.1} parent=1 // loop_footer
      %s24 = sadd.s32 1, %s20
    $region7: #{net1_forward.1} parent=1 // loop_footer_branch
      %19 = sbr.rel target = $region3
    $region8: #{net1_forward.1} parent=1 // loop_exit
      _
    %2537 = vsyncpa [#allocation3], 1
    %s2538 = scalar_lea.sflag [#allocation3], 1
    %2539 = vsyncpa %s2538, 1
    %2540 = vsyncpa [#allocation5], 1
    %2541 = vsyncpa [#allocation8], 1

</llo_original>
